<compile_context>
chip_gen: v7x
topology: tpu7x:2x2x1
jax: 0.10.0
libtpu: 0.0.40
codegen_flags: <defaults>
</compile_context>

<pallas_src>
import math
import functools

import jax
import jax.numpy as jnp
from jax.experimental import pallas as pl
from jax.experimental.pallas import tpu as pltpu


# ----------------------------------------------------------------------------
# Relative position bias (T5-style), plain JAX in the wrapper (tiny tensor).
# Mirrors RelativePositionBias.forward exactly.
# ----------------------------------------------------------------------------
def relative_position_bias(table, n, *, num_buckets=32, max_distance=128):
    """table: (num_buckets, heads) embedding weight. Returns (heads, n, n) f32."""
    q_pos = jnp.arange(n)
    k_pos = jnp.arange(n)
    rel = k_pos[None, :] - q_pos[:, None]          # (n, n)
    m = -rel
    nb = num_buckets // 2
    ret = (m < 0).astype(jnp.int32) * nb
    m_abs = jnp.abs(m)
    max_exact = nb // 2
    is_small = m_abs < max_exact
    # clamp only guards log(0); the large branch is unaffected (selected by where)
    val_if_large = max_exact + (
        jnp.log(jnp.maximum(m_abs, 1).astype(jnp.float32) / max_exact)
        / math.log(max_distance / max_exact)
        * (nb - max_exact)
    ).astype(jnp.int32)
    val_if_large = jnp.minimum(val_if_large, nb - 1)
    bucket = ret + jnp.where(is_small, m_abs, val_if_large)        # (n, n)
    values = table[bucket]                                         # (n, n, heads)
    return jnp.transpose(values, (2, 0, 1)).astype(jnp.float32)    # (heads, n, n)


# ----------------------------------------------------------------------------
# Fused temporal self-attention kernel (Bt batch rows per grid step)
# ----------------------------------------------------------------------------
def _attn_kernel(hs_ref, wqkv_ref, wo_ref, bo_ref, bias_ref, o_ref,
                 *, heads, dim_head, scale):
    """hs_ref:   (Bt, F, C)  bf16        wqkv_ref: (C, 3*inner) bf16
       wo_ref:   (inner, Dq) bf16        bo_ref:   (1, Dq) f32
       bias_ref: (heads, F, F) f32       o_ref:    (Bt, F, Dq)"""
    bt, f, c = hs_ref.shape
    dq = o_ref.shape[2]
    inner = heads * dim_head
    rows = bt * f

    hs = hs_ref[...].reshape(rows, c)                               # bf16, free reshape

    # One full-width projection matmul for Q, K and V together (f32 accumulate).
    qkv = jnp.dot(hs, wqkv_ref[...],
                  preferred_element_type=jnp.float32)               # (rows, 3*inner) f32

    head_outs = []
    for h in range(heads):
        lo = h * dim_head
        qh = (qkv[:, lo:lo + dim_head] * scale).reshape(bt, f, dim_head)
        kh = qkv[:, inner + lo:inner + lo + dim_head].reshape(bt, f, dim_head)
        vh = qkv[:, 2 * inner + lo:2 * inner + lo + dim_head].reshape(bt, f, dim_head)

        # scores = scale*q @ k^T + rel-pos bias (broadcast over the batch tile)
        scores = jnp.einsum('bid,bjd->bij', qh, kh,
                            preferred_element_type=jnp.float32)     # (Bt, F, F)
        scores = scores + bias_ref[h]

        # stable softmax in f32; reciprocal goes to the (otherwise idle) EUP slot
        scores = scores - jnp.max(scores, axis=-1, keepdims=True)
        e = jnp.exp(scores)
        l = jnp.sum(e, axis=-1, keepdims=True)
        probs = e * pl.reciprocal(l, approx=True)

        head_outs.append(jnp.einsum('bij,bjd->bid', probs, vh,
                                    preferred_element_type=jnp.float32))

    # Single full-depth output projection (+ bias) after the head loop.
    attn = jnp.concatenate(head_outs, axis=-1).reshape(rows, inner)  # (rows, inner) f32
    out = jnp.dot(attn.astype(wo_ref.dtype), wo_ref[...],
                  preferred_element_type=jnp.float32) + bo_ref[...]  # (rows, Dq) f32
    o_ref[...] = out.reshape(bt, f, dq).astype(o_ref.dtype)


def _pick_batch_tile(B, F, rows_target=512):
    """Largest divisor of B such that Bt*F ~ rows_target and grid length >= 2."""
    cap = max(1, rows_target // max(F, 1))
    if B >= 2:
        cap = min(cap, max(1, B // 2))   # keep >=2 grid steps (v7x megacore)
    for cand in range(min(cap, B), 0, -1):
        if B % cand == 0:
            return cand
    return 1


def temporal_attention(hidden_states, wq, wk, wv, wo, bo, table, *,
                       heads, dim_head, num_buckets=32, max_distance=32):
    """hidden_states: (B, F, C).
       wq/wk/wv: (C, heads*dim_head); wo: (heads*dim_head, Dq); bo: (Dq,);
       table: (num_buckets, heads) relative-position embedding weight.
       Returns (B, F, Dq) — TemporalAttention.forward (default config)."""
    B, F, C = hidden_states.shape
    inner = heads * dim_head
    Dq = wo.shape[1]
    scale = dim_head ** (-0.5)
    out_dtype = hidden_states.dtype

    # (heads, F, F) bias computed once in plain JAX (tiny), fed to the kernel.
    bias = relative_position_bias(table, F, num_buckets=num_buckets,
                                  max_distance=max_distance)

    # bf16 MXU inputs for the two big projections; f32 accumulation in-kernel.
    cdt = jnp.bfloat16
    hs_b = hidden_states.astype(cdt)
    wqkv = jnp.concatenate([wq, wk, wv], axis=1).astype(cdt)   # (C, 3*inner)
    wo_b = wo.astype(cdt)
    bo2 = bo.reshape(1, Dq).astype(jnp.float32)

    Bt = _pick_batch_tile(B, F)
    grid = (B // Bt,)

    kernel = functools.partial(_attn_kernel, heads=heads, dim_head=dim_head,
                               scale=scale)
    return pl.pallas_call(
        kernel,
        out_shape=jax.ShapeDtypeStruct((B, F, Dq), out_dtype),
        grid=grid,
        in_specs=[
            pl.BlockSpec((Bt, F, C), lambda b: (b, 0, 0)),
            pl.BlockSpec((C, 3 * inner), lambda b: (0, 0)),
            pl.BlockSpec((inner, Dq), lambda b: (0, 0)),
            pl.BlockSpec((1, Dq), lambda b: (0, 0)),
            pl.BlockSpec((heads, F, F), lambda b: (0, 0, 0)),
        ],
        out_specs=pl.BlockSpec((Bt, F, Dq), lambda b: (b, 0, 0)),
        compiler_params=pltpu.CompilerParams(
            dimension_semantics=("parallel",),       # batch tiles split over TCs
            vmem_limit_bytes=64 * 1024 * 1024,
        ),
    )(hs_b, wqkv, wo_b, bo2, bias)


# ----------------------------------------------------------------------------
# Pure-JAX reference (mirrors the PyTorch module, all-f32 HIGHEST precision)
# ----------------------------------------------------------------------------
_HIGH = jax.lax.Precision.HIGHEST


def _reference_forward(hs, wq, wk, wv, wo, bo, table, heads, dim_head,
                       num_buckets, max_distance):
    B, F, C = hs.shape
    scale = dim_head ** (-0.5)
    bias = relative_position_bias(table, F, num_buckets=num_buckets,
                                  max_distance=max_distance)

    q = jnp.dot(hs, wq, precision=_HIGH)
    k = jnp.dot(hs, wk, precision=_HIGH)
    v = jnp.dot(hs, wv, precision=_HIGH)

    def split(t):
        return t.reshape(B, F, heads, dim_head).transpose(0, 2, 1, 3)

    q = split(q) * scale
    k = split(k)
    v = split(v)

    scores = jnp.einsum('bhid,bhjd->bhij', q, k, precision=_HIGH) + bias[None]
    scores = scores - jnp.max(scores, axis=-1, keepdims=True)
    probs = jax.nn.softmax(scores, axis=-1)
    out = jnp.einsum('bhij,bhjd->bhid', probs, v, precision=_HIGH)
    out = out.transpose(0, 2, 1, 3).reshape(B, F, heads * dim_head)
    return jnp.dot(out, wo, precision=_HIGH) + bo


# ----------------------------------------------------------------------------
if __name__ == "__main__":
    # TemporalAttention config (small test shapes).
    B, F, C = 2, 16, 32                   # (batch*spatial, frames, channels)
    heads, dim_head = 8, 8                # inner_dim = 64
    num_buckets, max_distance = 32, 32    # RelativePositionBias(max_distance=32)
    inner = heads * dim_head

    key = jax.random.PRNGKey(0)
    k_hs, k_q, k_k, k_v, k_o, k_b, k_t = jax.random.split(key, 7)

    hidden_states = jax.random.normal(k_hs, (B, F, C), dtype=jnp.float32)
    wq = jax.random.normal(k_q, (C, inner), dtype=jnp.float32) / math.sqrt(C)
    wk = jax.random.normal(k_k, (C, inner), dtype=jnp.float32) / math.sqrt(C)
    wv = jax.random.normal(k_v, (C, inner), dtype=jnp.float32) / math.sqrt(C)
    wo = jax.random.normal(k_o, (inner, C), dtype=jnp.float32) / math.sqrt(inner)
    bo = jax.random.normal(k_b, (C,), dtype=jnp.float32) * 0.1
    table = jax.random.normal(k_t, (num_buckets, heads), dtype=jnp.float32)

    fwd = jax.jit(functools.partial(
        temporal_attention, heads=heads, dim_head=dim_head,
        num_buckets=num_buckets, max_distance=max_distance))

    out = fwd(hidden_states, wq, wk, wv, wo, bo, table)
    out = jax.block_until_ready(out)

    # Check against the PyTorch-equivalent all-f32 reference.  The kernel
    # feeds bf16 to the MXU for the projections (f32 accumulation), so the
    # tolerance is looser than the previous all-f32 kernel.
    ref_out = _reference_forward(hidden_states, wq, wk, wv, wo, bo, table,
                                 heads, dim_head, num_buckets, max_distance)
    assert out.shape == (B, F, C)
    assert jnp.allclose(out.astype(jnp.float32), ref_out, rtol=5e-2, atol=5e-2), \
        "output mismatch vs reference"

    print("KERNEL_OK")
</pallas_src>

<mosaic_0001>
module attributes {stable_mosaic.version = 11 : i64} {
  func.func @_attn_kernel(%arg0: i32, %arg1: memref<1x16x32xbf16, #tpu.memory_space<vmem>>, %arg2: memref<32x192xbf16, #tpu.memory_space<vmem>>, %arg3: memref<64x32xbf16, #tpu.memory_space<vmem>>, %arg4: memref<1x32xf32, #tpu.memory_space<vmem>>, %arg5: memref<8x16x16xf32, #tpu.memory_space<vmem>>, %arg6: memref<1x16x32xf32, #tpu.memory_space<vmem>>) attributes {dimension_semantics = [#tpu.dimension_semantics<parallel>], iteration_bounds = array<i64: 2>, scalar_prefetch = 0 : i64, scratch_operands = 0 : i64, tpu.core_type = #tpu.core_type<tc>, window_params = [{transform_indices = @transform_0, window_bounds = array<i64: 1, 16, 32>}, {pipeline_mode = #tpu.pipeline_mode<synchronous>, transform_indices = @transform_1, window_bounds = array<i64: 32, 192>}, {pipeline_mode = #tpu.pipeline_mode<synchronous>, transform_indices = @transform_2, window_bounds = array<i64: 64, 32>}, {pipeline_mode = #tpu.pipeline_mode<synchronous>, transform_indices = @transform_3, window_bounds = array<i64: 1, 32>}, {pipeline_mode = #tpu.pipeline_mode<synchronous>, transform_indices = @transform_4, window_bounds = array<i64: 8, 16, 16>}, {transform_indices = @transform_5, window_bounds = array<i64: 1, 16, 32>}]} {
    %c0 = arith.constant 0 : index
    %c0_0 = arith.constant 0 : index
    %c0_1 = arith.constant 0 : index
    %0 = vector.load %arg1[%c0, %c0_0, %c0_1] : memref<1x16x32xbf16, #tpu.memory_space<vmem>>, vector<1x16x32xbf16>
    %1 = vector.shape_cast %0 : vector<1x16x32xbf16> to vector<16x32xbf16>
    %c0_2 = arith.constant 0 : index
    %c0_3 = arith.constant 0 : index
    %2 = vector.load %arg2[%c0_2, %c0_3] : memref<32x192xbf16, #tpu.memory_space<vmem>>, vector<32x192xbf16>
    %cst = arith.constant dense<0.000000e+00> : vector<16x192xf32>
    %3 = tpu.matmul %1, %2, %cst {dimension_numbers = #tpu.dot_dimension_numbers<[1], [0], [0], [1], [0, 0, 1, 1], [], []>} : vector<16x32xbf16>, vector<32x192xbf16>, vector<16x192xf32> -> vector<16x192xf32>
    %4 = vector.extract_strided_slice %3 {offsets = [0, 0], sizes = [16, 8], strides = [1, 1]} : vector<16x192xf32> to vector<16x8xf32>
    %cst_4 = arith.constant 0.353553385 : f32
    %5 = vector.broadcast %cst_4 : f32 to vector<16x8xf32>
    %6 = arith.mulf %4, %5 : vector<16x8xf32>
    %7 = vector.shape_cast %6 : vector<16x8xf32> to vector<1x16x8xf32>
    %8 = vector.extract_strided_slice %3 {offsets = [0, 64], sizes = [16, 8], strides = [1, 1]} : vector<16x192xf32> to vector<16x8xf32>
    %9 = vector.shape_cast %8 : vector<16x8xf32> to vector<1x16x8xf32>
    %10 = vector.extract_strided_slice %3 {offsets = [0, 128], sizes = [16, 8], strides = [1, 1]} : vector<16x192xf32> to vector<16x8xf32>
    %11 = vector.shape_cast %10 : vector<16x8xf32> to vector<1x16x8xf32>
    "tpu.trace_start"() <{level = 10 : i32, message = "bid,bjd->bij"}> : () -> ()
    %cst_5 = arith.constant dense<0.000000e+00> : vector<1x16x16xf32>
    %12 = tpu.matmul %7, %9, %cst_5 {dimension_numbers = #tpu.dot_dimension_numbers<[2], [2], [1], [1], [0, 0, 0, 1, 1, 1], [0], [0]>} : vector<1x16x8xf32>, vector<1x16x8xf32>, vector<1x16x16xf32> -> vector<1x16x16xf32>
    "tpu.trace_stop"() : () -> ()
    %c0_6 = arith.constant 0 : index
    %c0_7 = arith.constant 0 : index
    %c0_8 = arith.constant 0 : index
    %13 = vector.load %arg5[%c0_6, %c0_7, %c0_8] : memref<8x16x16xf32, #tpu.memory_space<vmem>>, vector<1x16x16xf32>
    %14 = vector.shape_cast %13 : vector<1x16x16xf32> to vector<16x16xf32>
    %15 = vector.shape_cast %14 : vector<16x16xf32> to vector<1x16x16xf32>
    %16 = arith.addf %12, %15 : vector<1x16x16xf32>
    %cst_9 = arith.constant dense<0xFF800000> : vector<1x16xf32>
    %17 = vector.multi_reduction <maximumf>, %16, %cst_9 [2] : vector<1x16x16xf32> to vector<1x16xf32>
    %18 = vector.shape_cast %17 : vector<1x16xf32> to vector<1x16x1xf32>
    %19 = vector.broadcast %18 : vector<1x16x1xf32> to vector<1x16x16xf32>
    %20 = arith.subf %16, %19 : vector<1x16x16xf32>
    %21 = math.exp %20 : vector<1x16x16xf32>
    %cst_10 = arith.constant dense<0.000000e+00> : vector<1x16xf32>
    %22 = vector.multi_reduction <add>, %21, %cst_10 [2] : vector<1x16x16xf32> to vector<1x16xf32>
    %23 = vector.shape_cast %22 : vector<1x16xf32> to vector<1x16x1xf32>
    %24 = tpu.reciprocal %23 {approx = true} : vector<1x16x1xf32> -> vector<1x16x1xf32>
    %25 = vector.broadcast %24 : vector<1x16x1xf32> to vector<1x16x16xf32>
    %26 = arith.mulf %21, %25 : vector<1x16x16xf32>
    "tpu.trace_start"() <{level = 10 : i32, message = "bij,bjd->bid"}> : () -> ()
    %cst_11 = arith.constant dense<0.000000e+00> : vector<1x16x8xf32>
    %27 = tpu.matmul %26, %11, %cst_11 {dimension_numbers = #tpu.dot_dimension_numbers<[2], [1], [1], [2], [0, 0, 0, 1, 1, 2], [0], [0]>} : vector<1x16x16xf32>, vector<1x16x8xf32>, vector<1x16x8xf32> -> vector<1x16x8xf32>
    "tpu.trace_stop"() : () -> ()
    %28 = vector.extract_strided_slice %3 {offsets = [0, 8], sizes = [16, 8], strides = [1, 1]} : vector<16x192xf32> to vector<16x8xf32>
    %cst_12 = arith.constant 0.353553385 : f32
    %29 = vector.broadcast %cst_12 : f32 to vector<16x8xf32>
    %30 = arith.mulf %28, %29 : vector<16x8xf32>
    %31 = vector.shape_cast %30 : vector<16x8xf32> to vector<1x16x8xf32>
    %32 = vector.extract_strided_slice %3 {offsets = [0, 72], sizes = [16, 8], strides = [1, 1]} : vector<16x192xf32> to vector<16x8xf32>
    %33 = vector.shape_cast %32 : vector<16x8xf32> to vector<1x16x8xf32>
    %34 = vector.extract_strided_slice %3 {offsets = [0, 136], sizes = [16, 8], strides = [1, 1]} : vector<16x192xf32> to vector<16x8xf32>
    %35 = vector.shape_cast %34 : vector<16x8xf32> to vector<1x16x8xf32>
    "tpu.trace_start"() <{level = 10 : i32, message = "bid,bjd->bij"}> : () -> ()
    %cst_13 = arith.constant dense<0.000000e+00> : vector<1x16x16xf32>
    %36 = tpu.matmul %31, %33, %cst_13 {dimension_numbers = #tpu.dot_dimension_numbers<[2], [2], [1], [1], [0, 0, 0, 1, 1, 1], [0], [0]>} : vector<1x16x8xf32>, vector<1x16x8xf32>, vector<1x16x16xf32> -> vector<1x16x16xf32>
    "tpu.trace_stop"() : () -> ()
    %c1 = arith.constant 1 : index
    %c0_14 = arith.constant 0 : index
    %c0_15 = arith.constant 0 : index
    %37 = vector.load %arg5[%c1, %c0_14, %c0_15] : memref<8x16x16xf32, #tpu.memory_space<vmem>>, vector<1x16x16xf32>
    %38 = vector.shape_cast %37 : vector<1x16x16xf32> to vector<16x16xf32>
    %39 = vector.shape_cast %38 : vector<16x16xf32> to vector<1x16x16xf32>
    %40 = arith.addf %36, %39 : vector<1x16x16xf32>
    %cst_16 = arith.constant dense<0xFF800000> : vector<1x16xf32>
    %41 = vector.multi_reduction <maximumf>, %40, %cst_16 [2] : vector<1x16x16xf32> to vector<1x16xf32>
    %42 = vector.shape_cast %41 : vector<1x16xf32> to vector<1x16x1xf32>
    %43 = vector.broadcast %42 : vector<1x16x1xf32> to vector<1x16x16xf32>
    %44 = arith.subf %40, %43 : vector<1x16x16xf32>
    %45 = math.exp %44 : vector<1x16x16xf32>
    %cst_17 = arith.constant dense<0.000000e+00> : vector<1x16xf32>
    %46 = vector.multi_reduction <add>, %45, %cst_17 [2] : vector<1x16x16xf32> to vector<1x16xf32>
    %47 = vector.shape_cast %46 : vector<1x16xf32> to vector<1x16x1xf32>
    %48 = tpu.reciprocal %47 {approx = true} : vector<1x16x1xf32> -> vector<1x16x1xf32>
    %49 = vector.broadcast %48 : vector<1x16x1xf32> to vector<1x16x16xf32>
    %50 = arith.mulf %45, %49 : vector<1x16x16xf32>
    "tpu.trace_start"() <{level = 10 : i32, message = "bij,bjd->bid"}> : () -> ()
    %cst_18 = arith.constant dense<0.000000e+00> : vector<1x16x8xf32>
    %51 = tpu.matmul %50, %35, %cst_18 {dimension_numbers = #tpu.dot_dimension_numbers<[2], [1], [1], [2], [0, 0, 0, 1, 1, 2], [0], [0]>} : vector<1x16x16xf32>, vector<1x16x8xf32>, vector<1x16x8xf32> -> vector<1x16x8xf32>
    "tpu.trace_stop"() : () -> ()
    %52 = vector.extract_strided_slice %3 {offsets = [0, 16], sizes = [16, 8], strides = [1, 1]} : vector<16x192xf32> to vector<16x8xf32>
    %cst_19 = arith.constant 0.353553385 : f32
    %53 = vector.broadcast %cst_19 : f32 to vector<16x8xf32>
    %54 = arith.mulf %52, %53 : vector<16x8xf32>
    %55 = vector.shape_cast %54 : vector<16x8xf32> to vector<1x16x8xf32>
    %56 = vector.extract_strided_slice %3 {offsets = [0, 80], sizes = [16, 8], strides = [1, 1]} : vector<16x192xf32> to vector<16x8xf32>
    %57 = vector.shape_cast %56 : vector<16x8xf32> to vector<1x16x8xf32>
    %58 = vector.extract_strided_slice %3 {offsets = [0, 144], sizes = [16, 8], strides = [1, 1]} : vector<16x192xf32> to vector<16x8xf32>
    %59 = vector.shape_cast %58 : vector<16x8xf32> to vector<1x16x8xf32>
    "tpu.trace_start"() <{level = 10 : i32, message = "bid,bjd->bij"}> : () -> ()
    %cst_20 = arith.constant dense<0.000000e+00> : vector<1x16x16xf32>
    %60 = tpu.matmul %55, %57, %cst_20 {dimension_numbers = #tpu.dot_dimension_numbers<[2], [2], [1], [1], [0, 0, 0, 1, 1, 1], [0], [0]>} : vector<1x16x8xf32>, vector<1x16x8xf32>, vector<1x16x16xf32> -> vector<1x16x16xf32>
    "tpu.trace_stop"() : () -> ()
    %c2 = arith.constant 2 : index
    %c0_21 = arith.constant 0 : index
    %c0_22 = arith.constant 0 : index
    %61 = vector.load %arg5[%c2, %c0_21, %c0_22] : memref<8x16x16xf32, #tpu.memory_space<vmem>>, vector<1x16x16xf32>
    %62 = vector.shape_cast %61 : vector<1x16x16xf32> to vector<16x16xf32>
    %63 = vector.shape_cast %62 : vector<16x16xf32> to vector<1x16x16xf32>
    %64 = arith.addf %60, %63 : vector<1x16x16xf32>
    %cst_23 = arith.constant dense<0xFF800000> : vector<1x16xf32>
    %65 = vector.multi_reduction <maximumf>, %64, %cst_23 [2] : vector<1x16x16xf32> to vector<1x16xf32>
    %66 = vector.shape_cast %65 : vector<1x16xf32> to vector<1x16x1xf32>
    %67 = vector.broadcast %66 : vector<1x16x1xf32> to vector<1x16x16xf32>
    %68 = arith.subf %64, %67 : vector<1x16x16xf32>
    %69 = math.exp %68 : vector<1x16x16xf32>
    %cst_24 = arith.constant dense<0.000000e+00> : vector<1x16xf32>
    %70 = vector.multi_reduction <add>, %69, %cst_24 [2] : vector<1x16x16xf32> to vector<1x16xf32>
    %71 = vector.shape_cast %70 : vector<1x16xf32> to vector<1x16x1xf32>
    %72 = tpu.reciprocal %71 {approx = true} : vector<1x16x1xf32> -> vector<1x16x1xf32>
    %73 = vector.broadcast %72 : vector<1x16x1xf32> to vector<1x16x16xf32>
    %74 = arith.mulf %69, %73 : vector<1x16x16xf32>
    "tpu.trace_start"() <{level = 10 : i32, message = "bij,bjd->bid"}> : () -> ()
    %cst_25 = arith.constant dense<0.000000e+00> : vector<1x16x8xf32>
    %75 = tpu.matmul %74, %59, %cst_25 {dimension_numbers = #tpu.dot_dimension_numbers<[2], [1], [1], [2], [0, 0, 0, 1, 1, 2], [0], [0]>} : vector<1x16x16xf32>, vector<1x16x8xf32>, vector<1x16x8xf32> -> vector<1x16x8xf32>
    "tpu.trace_stop"() : () -> ()
    %76 = vector.extract_strided_slice %3 {offsets = [0, 24], sizes = [16, 8], strides = [1, 1]} : vector<16x192xf32> to vector<16x8xf32>
    %cst_26 = arith.constant 0.353553385 : f32
    %77 = vector.broadcast %cst_26 : f32 to vector<16x8xf32>
    %78 = arith.mulf %76, %77 : vector<16x8xf32>
    %79 = vector.shape_cast %78 : vector<16x8xf32> to vector<1x16x8xf32>
    %80 = vector.extract_strided_slice %3 {offsets = [0, 88], sizes = [16, 8], strides = [1, 1]} : vector<16x192xf32> to vector<16x8xf32>
    %81 = vector.shape_cast %80 : vector<16x8xf32> to vector<1x16x8xf32>
    %82 = vector.extract_strided_slice %3 {offsets = [0, 152], sizes = [16, 8], strides = [1, 1]} : vector<16x192xf32> to vector<16x8xf32>
    %83 = vector.shape_cast %82 : vector<16x8xf32> to vector<1x16x8xf32>
    "tpu.trace_start"() <{level = 10 : i32, message = "bid,bjd->bij"}> : () -> ()
    %cst_27 = arith.constant dense<0.000000e+00> : vector<1x16x16xf32>
    %84 = tpu.matmul %79, %81, %cst_27 {dimension_numbers = #tpu.dot_dimension_numbers<[2], [2], [1], [1], [0, 0, 0, 1, 1, 1], [0], [0]>} : vector<1x16x8xf32>, vector<1x16x8xf32>, vector<1x16x16xf32> -> vector<1x16x16xf32>
    "tpu.trace_stop"() : () -> ()
    %c3 = arith.constant 3 : index
    %c0_28 = arith.constant 0 : index
    %c0_29 = arith.constant 0 : index
    %85 = vector.load %arg5[%c3, %c0_28, %c0_29] : memref<8x16x16xf32, #tpu.memory_space<vmem>>, vector<1x16x16xf32>
    %86 = vector.shape_cast %85 : vector<1x16x16xf32> to vector<16x16xf32>
    %87 = vector.shape_cast %86 : vector<16x16xf32> to vector<1x16x16xf32>
    %88 = arith.addf %84, %87 : vector<1x16x16xf32>
    %cst_30 = arith.constant dense<0xFF800000> : vector<1x16xf32>
    %89 = vector.multi_reduction <maximumf>, %88, %cst_30 [2] : vector<1x16x16xf32> to vector<1x16xf32>
    %90 = vector.shape_cast %89 : vector<1x16xf32> to vector<1x16x1xf32>
    %91 = vector.broadcast %90 : vector<1x16x1xf32> to vector<1x16x16xf32>
    %92 = arith.subf %88, %91 : vector<1x16x16xf32>
    %93 = math.exp %92 : vector<1x16x16xf32>
    %cst_31 = arith.constant dense<0.000000e+00> : vector<1x16xf32>
    %94 = vector.multi_reduction <add>, %93, %cst_31 [2] : vector<1x16x16xf32> to vector<1x16xf32>
    %95 = vector.shape_cast %94 : vector<1x16xf32> to vector<1x16x1xf32>
    %96 = tpu.reciprocal %95 {approx = true} : vector<1x16x1xf32> -> vector<1x16x1xf32>
    %97 = vector.broadcast %96 : vector<1x16x1xf32> to vector<1x16x16xf32>
    %98 = arith.mulf %93, %97 : vector<1x16x16xf32>
    "tpu.trace_start"() <{level = 10 : i32, message = "bij,bjd->bid"}> : () -> ()
    %cst_32 = arith.constant dense<0.000000e+00> : vector<1x16x8xf32>
    %99 = tpu.matmul %98, %83, %cst_32 {dimension_numbers = #tpu.dot_dimension_numbers<[2], [1], [1], [2], [0, 0, 0, 1, 1, 2], [0], [0]>} : vector<1x16x16xf32>, vector<1x16x8xf32>, vector<1x16x8xf32> -> vector<1x16x8xf32>
    "tpu.trace_stop"() : () -> ()
    %100 = vector.extract_strided_slice %3 {offsets = [0, 32], sizes = [16, 8], strides = [1, 1]} : vector<16x192xf32> to vector<16x8xf32>
    %cst_33 = arith.constant 0.353553385 : f32
    %101 = vector.broadcast %cst_33 : f32 to vector<16x8xf32>
    %102 = arith.mulf %100, %101 : vector<16x8xf32>
    %103 = vector.shape_cast %102 : vector<16x8xf32> to vector<1x16x8xf32>
    %104 = vector.extract_strided_slice %3 {offsets = [0, 96], sizes = [16, 8], strides = [1, 1]} : vector<16x192xf32> to vector<16x8xf32>
    %105 = vector.shape_cast %104 : vector<16x8xf32> to vector<1x16x8xf32>
    %106 = vector.extract_strided_slice %3 {offsets = [0, 160], sizes = [16, 8], strides = [1, 1]} : vector<16x192xf32> to vector<16x8xf32>
    %107 = vector.shape_cast %106 : vector<16x8xf32> to vector<1x16x8xf32>
    "tpu.trace_start"() <{level = 10 : i32, message = "bid,bjd->bij"}> : () -> ()
    %cst_34 = arith.constant dense<0.000000e+00> : vector<1x16x16xf32>
    %108 = tpu.matmul %103, %105, %cst_34 {dimension_numbers = #tpu.dot_dimension_numbers<[2], [2], [1], [1], [0, 0, 0, 1, 1, 1], [0], [0]>} : vector<1x16x8xf32>, vector<1x16x8xf32>, vector<1x16x16xf32> -> vector<1x16x16xf32>
    "tpu.trace_stop"() : () -> ()
    %c4 = arith.constant 4 : index
    %c0_35 = arith.constant 0 : index
    %c0_36 = arith.constant 0 : index
    %109 = vector.load %arg5[%c4, %c0_35, %c0_36] : memref<8x16x16xf32, #tpu.memory_space<vmem>>, vector<1x16x16xf32>
    %110 = vector.shape_cast %109 : vector<1x16x16xf32> to vector<16x16xf32>
    %111 = vector.shape_cast %110 : vector<16x16xf32> to vector<1x16x16xf32>
    %112 = arith.addf %108, %111 : vector<1x16x16xf32>
    %cst_37 = arith.constant dense<0xFF800000> : vector<1x16xf32>
    %113 = vector.multi_reduction <maximumf>, %112, %cst_37 [2] : vector<1x16x16xf32> to vector<1x16xf32>
    %114 = vector.shape_cast %113 : vector<1x16xf32> to vector<1x16x1xf32>
    %115 = vector.broadcast %114 : vector<1x16x1xf32> to vector<1x16x16xf32>
    %116 = arith.subf %112, %115 : vector<1x16x16xf32>
    %117 = math.exp %116 : vector<1x16x16xf32>
    %cst_38 = arith.constant dense<0.000000e+00> : vector<1x16xf32>
    %118 = vector.multi_reduction <add>, %117, %cst_38 [2] : vector<1x16x16xf32> to vector<1x16xf32>
    %119 = vector.shape_cast %118 : vector<1x16xf32> to vector<1x16x1xf32>
    %120 = tpu.reciprocal %119 {approx = true} : vector<1x16x1xf32> -> vector<1x16x1xf32>
    %121 = vector.broadcast %120 : vector<1x16x1xf32> to vector<1x16x16xf32>
    %122 = arith.mulf %117, %121 : vector<1x16x16xf32>
    "tpu.trace_start"() <{level = 10 : i32, message = "bij,bjd->bid"}> : () -> ()
    %cst_39 = arith.constant dense<0.000000e+00> : vector<1x16x8xf32>
    %123 = tpu.matmul %122, %107, %cst_39 {dimension_numbers = #tpu.dot_dimension_numbers<[2], [1], [1], [2], [0, 0, 0, 1, 1, 2], [0], [0]>} : vector<1x16x16xf32>, vector<1x16x8xf32>, vector<1x16x8xf32> -> vector<1x16x8xf32>
    "tpu.trace_stop"() : () -> ()
    %124 = vector.extract_strided_slice %3 {offsets = [0, 40], sizes = [16, 8], strides = [1, 1]} : vector<16x192xf32> to vector<16x8xf32>
    %cst_40 = arith.constant 0.353553385 : f32
    %125 = vector.broadcast %cst_40 : f32 to vector<16x8xf32>
    %126 = arith.mulf %124, %125 : vector<16x8xf32>
    %127 = vector.shape_cast %126 : vector<16x8xf32> to vector<1x16x8xf32>
    %128 = vector.extract_strided_slice %3 {offsets = [0, 104], sizes = [16, 8], strides = [1, 1]} : vector<16x192xf32> to vector<16x8xf32>
    %129 = vector.shape_cast %128 : vector<16x8xf32> to vector<1x16x8xf32>
    %130 = vector.extract_strided_slice %3 {offsets = [0, 168], sizes = [16, 8], strides = [1, 1]} : vector<16x192xf32> to vector<16x8xf32>
    %131 = vector.shape_cast %130 : vector<16x8xf32> to vector<1x16x8xf32>
    "tpu.trace_start"() <{level = 10 : i32, message = "bid,bjd->bij"}> : () -> ()
    %cst_41 = arith.constant dense<0.000000e+00> : vector<1x16x16xf32>
    %132 = tpu.matmul %127, %129, %cst_41 {dimension_numbers = #tpu.dot_dimension_numbers<[2], [2], [1], [1], [0, 0, 0, 1, 1, 1], [0], [0]>} : vector<1x16x8xf32>, vector<1x16x8xf32>, vector<1x16x16xf32> -> vector<1x16x16xf32>
    "tpu.trace_stop"() : () -> ()
    %c5 = arith.constant 5 : index
    %c0_42 = arith.constant 0 : index
    %c0_43 = arith.constant 0 : index
    %133 = vector.load %arg5[%c5, %c0_42, %c0_43] : memref<8x16x16xf32, #tpu.memory_space<vmem>>, vector<1x16x16xf32>
    %134 = vector.shape_cast %133 : vector<1x16x16xf32> to vector<16x16xf32>
    %135 = vector.shape_cast %134 : vector<16x16xf32> to vector<1x16x16xf32>
    %136 = arith.addf %132, %135 : vector<1x16x16xf32>
    %cst_44 = arith.constant dense<0xFF800000> : vector<1x16xf32>
    %137 = vector.multi_reduction <maximumf>, %136, %cst_44 [2] : vector<1x16x16xf32> to vector<1x16xf32>
    %138 = vector.shape_cast %137 : vector<1x16xf32> to vector<1x16x1xf32>
    %139 = vector.broadcast %138 : vector<1x16x1xf32> to vector<1x16x16xf32>
    %140 = arith.subf %136, %139 : vector<1x16x16xf32>
    %141 = math.exp %140 : vector<1x16x16xf32>
    %cst_45 = arith.constant dense<0.000000e+00> : vector<1x16xf32>
    %142 = vector.multi_reduction <add>, %141, %cst_45 [2] : vector<1x16x16xf32> to vector<1x16xf32>
    %143 = vector.shape_cast %142 : vector<1x16xf32> to vector<1x16x1xf32>
    %144 = tpu.reciprocal %143 {approx = true} : vector<1x16x1xf32> -> vector<1x16x1xf32>
    %145 = vector.broadcast %144 : vector<1x16x1xf32> to vector<1x16x16xf32>
    %146 = arith.mulf %141, %145 : vector<1x16x16xf32>
    "tpu.trace_start"() <{level = 10 : i32, message = "bij,bjd->bid"}> : () -> ()
    %cst_46 = arith.constant dense<0.000000e+00> : vector<1x16x8xf32>
    %147 = tpu.matmul %146, %131, %cst_46 {dimension_numbers = #tpu.dot_dimension_numbers<[2], [1], [1], [2], [0, 0, 0, 1, 1, 2], [0], [0]>} : vector<1x16x16xf32>, vector<1x16x8xf32>, vector<1x16x8xf32> -> vector<1x16x8xf32>
    "tpu.trace_stop"() : () -> ()
    %148 = vector.extract_strided_slice %3 {offsets = [0, 48], sizes = [16, 8], strides = [1, 1]} : vector<16x192xf32> to vector<16x8xf32>
    %cst_47 = arith.constant 0.353553385 : f32
    %149 = vector.broadcast %cst_47 : f32 to vector<16x8xf32>
    %150 = arith.mulf %148, %149 : vector<16x8xf32>
    %151 = vector.shape_cast %150 : vector<16x8xf32> to vector<1x16x8xf32>
    %152 = vector.extract_strided_slice %3 {offsets = [0, 112], sizes = [16, 8], strides = [1, 1]} : vector<16x192xf32> to vector<16x8xf32>
    %153 = vector.shape_cast %152 : vector<16x8xf32> to vector<1x16x8xf32>
    %154 = vector.extract_strided_slice %3 {offsets = [0, 176], sizes = [16, 8], strides = [1, 1]} : vector<16x192xf32> to vector<16x8xf32>
    %155 = vector.shape_cast %154 : vector<16x8xf32> to vector<1x16x8xf32>
    "tpu.trace_start"() <{level = 10 : i32, message = "bid,bjd->bij"}> : () -> ()
    %cst_48 = arith.constant dense<0.000000e+00> : vector<1x16x16xf32>
    %156 = tpu.matmul %151, %153, %cst_48 {dimension_numbers = #tpu.dot_dimension_numbers<[2], [2], [1], [1], [0, 0, 0, 1, 1, 1], [0], [0]>} : vector<1x16x8xf32>, vector<1x16x8xf32>, vector<1x16x16xf32> -> vector<1x16x16xf32>
    "tpu.trace_stop"() : () -> ()
    %c6 = arith.constant 6 : index
    %c0_49 = arith.constant 0 : index
    %c0_50 = arith.constant 0 : index
    %157 = vector.load %arg5[%c6, %c0_49, %c0_50] : memref<8x16x16xf32, #tpu.memory_space<vmem>>, vector<1x16x16xf32>
    %158 = vector.shape_cast %157 : vector<1x16x16xf32> to vector<16x16xf32>
    %159 = vector.shape_cast %158 : vector<16x16xf32> to vector<1x16x16xf32>
    %160 = arith.addf %156, %159 : vector<1x16x16xf32>
    %cst_51 = arith.constant dense<0xFF800000> : vector<1x16xf32>
    %161 = vector.multi_reduction <maximumf>, %160, %cst_51 [2] : vector<1x16x16xf32> to vector<1x16xf32>
    %162 = vector.shape_cast %161 : vector<1x16xf32> to vector<1x16x1xf32>
    %163 = vector.broadcast %162 : vector<1x16x1xf32> to vector<1x16x16xf32>
    %164 = arith.subf %160, %163 : vector<1x16x16xf32>
    %165 = math.exp %164 : vector<1x16x16xf32>
    %cst_52 = arith.constant dense<0.000000e+00> : vector<1x16xf32>
    %166 = vector.multi_reduction <add>, %165, %cst_52 [2] : vector<1x16x16xf32> to vector<1x16xf32>
    %167 = vector.shape_cast %166 : vector<1x16xf32> to vector<1x16x1xf32>
    %168 = tpu.reciprocal %167 {approx = true} : vector<1x16x1xf32> -> vector<1x16x1xf32>
    %169 = vector.broadcast %168 : vector<1x16x1xf32> to vector<1x16x16xf32>
    %170 = arith.mulf %165, %169 : vector<1x16x16xf32>
    "tpu.trace_start"() <{level = 10 : i32, message = "bij,bjd->bid"}> : () -> ()
    %cst_53 = arith.constant dense<0.000000e+00> : vector<1x16x8xf32>
    %171 = tpu.matmul %170, %155, %cst_53 {dimension_numbers = #tpu.dot_dimension_numbers<[2], [1], [1], [2], [0, 0, 0, 1, 1, 2], [0], [0]>} : vector<1x16x16xf32>, vector<1x16x8xf32>, vector<1x16x8xf32> -> vector<1x16x8xf32>
    "tpu.trace_stop"() : () -> ()
    %172 = vector.extract_strided_slice %3 {offsets = [0, 56], sizes = [16, 8], strides = [1, 1]} : vector<16x192xf32> to vector<16x8xf32>
    %cst_54 = arith.constant 0.353553385 : f32
    %173 = vector.broadcast %cst_54 : f32 to vector<16x8xf32>
    %174 = arith.mulf %172, %173 : vector<16x8xf32>
    %175 = vector.shape_cast %174 : vector<16x8xf32> to vector<1x16x8xf32>
    %176 = vector.extract_strided_slice %3 {offsets = [0, 120], sizes = [16, 8], strides = [1, 1]} : vector<16x192xf32> to vector<16x8xf32>
    %177 = vector.shape_cast %176 : vector<16x8xf32> to vector<1x16x8xf32>
    %178 = vector.extract_strided_slice %3 {offsets = [0, 184], sizes = [16, 8], strides = [1, 1]} : vector<16x192xf32> to vector<16x8xf32>
    %179 = vector.shape_cast %178 : vector<16x8xf32> to vector<1x16x8xf32>
    "tpu.trace_start"() <{level = 10 : i32, message = "bid,bjd->bij"}> : () -> ()
    %cst_55 = arith.constant dense<0.000000e+00> : vector<1x16x16xf32>
    %180 = tpu.matmul %175, %177, %cst_55 {dimension_numbers = #tpu.dot_dimension_numbers<[2], [2], [1], [1], [0, 0, 0, 1, 1, 1], [0], [0]>} : vector<1x16x8xf32>, vector<1x16x8xf32>, vector<1x16x16xf32> -> vector<1x16x16xf32>
    "tpu.trace_stop"() : () -> ()
    %c7 = arith.constant 7 : index
    %c0_56 = arith.constant 0 : index
    %c0_57 = arith.constant 0 : index
    %181 = vector.load %arg5[%c7, %c0_56, %c0_57] : memref<8x16x16xf32, #tpu.memory_space<vmem>>, vector<1x16x16xf32>
    %182 = vector.shape_cast %181 : vector<1x16x16xf32> to vector<16x16xf32>
    %183 = vector.shape_cast %182 : vector<16x16xf32> to vector<1x16x16xf32>
    %184 = arith.addf %180, %183 : vector<1x16x16xf32>
    %cst_58 = arith.constant dense<0xFF800000> : vector<1x16xf32>
    %185 = vector.multi_reduction <maximumf>, %184, %cst_58 [2] : vector<1x16x16xf32> to vector<1x16xf32>
    %186 = vector.shape_cast %185 : vector<1x16xf32> to vector<1x16x1xf32>
    %187 = vector.broadcast %186 : vector<1x16x1xf32> to vector<1x16x16xf32>
    %188 = arith.subf %184, %187 : vector<1x16x16xf32>
    %189 = math.exp %188 : vector<1x16x16xf32>
    %cst_59 = arith.constant dense<0.000000e+00> : vector<1x16xf32>
    %190 = vector.multi_reduction <add>, %189, %cst_59 [2] : vector<1x16x16xf32> to vector<1x16xf32>
    %191 = vector.shape_cast %190 : vector<1x16xf32> to vector<1x16x1xf32>
    %192 = tpu.reciprocal %191 {approx = true} : vector<1x16x1xf32> -> vector<1x16x1xf32>
    %193 = vector.broadcast %192 : vector<1x16x1xf32> to vector<1x16x16xf32>
    %194 = arith.mulf %189, %193 : vector<1x16x16xf32>
    "tpu.trace_start"() <{level = 10 : i32, message = "bij,bjd->bid"}> : () -> ()
    %cst_60 = arith.constant dense<0.000000e+00> : vector<1x16x8xf32>
    %195 = tpu.matmul %194, %179, %cst_60 {dimension_numbers = #tpu.dot_dimension_numbers<[2], [1], [1], [2], [0, 0, 0, 1, 1, 2], [0], [0]>} : vector<1x16x16xf32>, vector<1x16x8xf32>, vector<1x16x8xf32> -> vector<1x16x8xf32>
    "tpu.trace_stop"() : () -> ()
    %196 = tpu.concatenate %27, %51, %75, %99, %123, %147, %171, %195 in 2 : vector<1x16x8xf32>, vector<1x16x8xf32>, vector<1x16x8xf32>, vector<1x16x8xf32>, vector<1x16x8xf32>, vector<1x16x8xf32>, vector<1x16x8xf32>, vector<1x16x8xf32> -> vector<1x16x64xf32>
    %197 = vector.shape_cast %196 : vector<1x16x64xf32> to vector<16x64xf32>
    %198 = arith.truncf %197 : vector<16x64xf32> to vector<16x64xbf16>
    %c0_61 = arith.constant 0 : index
    %c0_62 = arith.constant 0 : index
    %199 = vector.load %arg3[%c0_61, %c0_62] : memref<64x32xbf16, #tpu.memory_space<vmem>>, vector<64x32xbf16>
    %cst_63 = arith.constant dense<0.000000e+00> : vector<16x32xf32>
    %200 = tpu.matmul %198, %199, %cst_63 {dimension_numbers = #tpu.dot_dimension_numbers<[1], [0], [0], [1], [0, 0, 1, 1], [], []>} : vector<16x64xbf16>, vector<64x32xbf16>, vector<16x32xf32> -> vector<16x32xf32>
    %c0_64 = arith.constant 0 : index
    %c0_65 = arith.constant 0 : index
    %201 = vector.load %arg4[%c0_64, %c0_65] : memref<1x32xf32, #tpu.memory_space<vmem>>, vector<1x32xf32>
    %202 = vector.broadcast %201 : vector<1x32xf32> to vector<16x32xf32>
    %203 = arith.addf %200, %202 : vector<16x32xf32>
    %204 = vector.shape_cast %203 : vector<16x32xf32> to vector<1x16x32xf32>
    %c0_66 = arith.constant 0 : index
    %c0_67 = arith.constant 0 : index
    %c0_68 = arith.constant 0 : index
    %205 = vector.load %arg6[%c0_66, %c0_67, %c0_68] : memref<1x16x32xf32, #tpu.memory_space<vmem>>, vector<1x16x32xf32>
    tpu.vector_store %arg6[%c0_66, %c0_67, %c0_68], %204 {strides = array<i32>} : memref<1x16x32xf32, #tpu.memory_space<vmem>>, vector<1x16x32xf32>,
    return
  }
  func.func @transform_0(%arg0: i32) -> (i32, i32, i32) {
    %c0_i32 = arith.constant 0 : i32
    %c0_i32_0 = arith.constant 0 : i32
    %c0_i32_1 = arith.constant 0 : i32
    return %arg0, %c0_i32, %c0_i32_0 : i32, i32, i32
  }
  func.func @transform_1(%arg0: i32) -> (i32, i32) {
    %c0_i32 = arith.constant 0 : i32
    %c0_i32_0 = arith.constant 0 : i32
    %c0_i32_1 = arith.constant 0 : i32
    return %c0_i32, %c0_i32_0 : i32, i32
  }
  func.func @transform_2(%arg0: i32) -> (i32, i32) {
    %c0_i32 = arith.constant 0 : i32
    %c0_i32_0 = arith.constant 0 : i32
    %c0_i32_1 = arith.constant 0 : i32
    return %c0_i32, %c0_i32_0 : i32, i32
  }
  func.func @transform_3(%arg0: i32) -> (i32, i32) {
    %c0_i32 = arith.constant 0 : i32
    %c0_i32_0 = arith.constant 0 : i32
    %c0_i32_1 = arith.constant 0 : i32
    return %c0_i32, %c0_i32_0 : i32, i32
  }
  func.func @transform_4(%arg0: i32) -> (i32, i32, i32) {
    %c0_i32 = arith.constant 0 : i32
    %c0_i32_0 = arith.constant 0 : i32
    %c0_i32_1 = arith.constant 0 : i32
    %c0_i32_2 = arith.constant 0 : i32
    return %c0_i32, %c0_i32_0, %c0_i32_1 : i32, i32, i32
  }
  func.func @transform_5(%arg0: i32) -> (i32, i32, i32) {
    %c0_i32 = arith.constant 0 : i32
    %c0_i32_0 = arith.constant 0 : i32
    %c0_i32_1 = arith.constant 0 : i32
    return %arg0, %c0_i32, %c0_i32_0 : i32, i32, i32
  }
}

</mosaic_0001>

<llo_original>
// kernel: temporal_attention.1
$region0: #{temporal_attention.1}
  #allocation0 [shape = 'u32[]', space=smem, size = 0x4, offset = 0x4, fixed_abs, tag = 'smem constant byte address 0x4 - core index']
  #allocation1 [shape = 'u32[144,128]{1,0:T(1,128)}', space=vmem, size = 0x12000, scoped, tag = 'internal scratch']
  %s0 = inlined_call_operand.hbm [shape: bf16[2,16,32], index: 0, kind: input, shape index: {}]
  %s1 = inlined_call_operand.hbm [shape: bf16[32,192], index: 1, kind: input, shape index: {}]
  %s2 = inlined_call_operand.hbm [shape: bf16[64,32], index: 2, kind: input, shape index: {}]
  %s3 = inlined_call_operand.hbm [shape: f32[1,32], index: 3, kind: input, shape index: {}]
  %s4 = inlined_call_operand.hbm [shape: f32[8,16,16], index: 4, kind: input, shape index: {}]
  %s5 = inlined_call_operand.hbm [shape: f32[2,16,32], index: 5, kind: output, shape index: {}]
  %s6 = sld [smem:[#allocation0]]
  $region73: #{temporal_attention.1} parent=0
    _
  %s8 = ssub.s32 1, %s6
  %s9 = scalar_select 0, %s8, %s6
  $region1: #{temporal_attention.1} parent=0
    #allocation2 [shape = 'u8[8192]{0}', space=vmem, size = 0x2000, scoped, tag = 'input window, operand 0']
    #allocation3 [shape = 's32[2]{0}', space=sflag, size = 0x8, scoped, tag = 'scoped memory for temporal_attention.1']
    #allocation4 [shape = 's32[2]{0}', space=sflag, size = 0x8, scoped, tag = 'scoped memory for temporal_attention.1']
    #allocation5 [shape = 'u8[16384]{0}', space=vmem, size = 0x4000, scoped, tag = 'input window, operand 1, single buffered']
    #allocation6 [shape = 's32[1]{0}', space=sflag, size = 0x4, scoped, tag = 'scoped memory for temporal_attention.1']
    #allocation7 [shape = 'u8[16384]{0}', space=vmem, size = 0x4000, scoped, tag = 'input window, operand 2, single buffered']
    #allocation8 [shape = 'u8[512]{0}', space=vmem, size = 0x400, scoped, tag = 'input window, operand 3, single buffered']
    #allocation9 [shape = 's32[1]{0}', space=sflag, size = 0x4, scoped, tag = 'scoped memory for temporal_attention.1']
    #allocation10 [shape = 'u8[65536]{0}', space=vmem, size = 0x10000, scoped, tag = 'input window, operand 4, single buffered']
    #allocation11 [shape = 'u8[16384]{0}', space=vmem, size = 0x4000, scoped, tag = 'output window, operand 0']
    %10 = vsyncpa [#allocation3], 0
    %s11 = scalar_lea.sflag [#allocation3], 1
    %12 = vsyncpa %s11, 0
    %13 = vsyncpa [#allocation6], 0
    %14 = vsyncpa [#allocation9], 0
    %15 = vsyncpa [#allocation4], 0
    %s16 = scalar_lea.sflag [#allocation4], 1
    %17 = vsyncpa %s16, 0
    loop: start=0, step=1, limit=4
    $region2: #{temporal_attention.1} parent=1 // loop_pre_header
      _
    $region3: #{temporal_attention.1} parent=1 // loop_header
      %s19 = sphi 0, %s23
      %p20 = scmp.ge.s32.totalorder %s19, 4
      %s29 = sphi 0, %s31
      %s32 = sphi 0, %s29
      %s33 = sphi 0, %s32
      %s49 = sphi 0, %s33
      %s53 = sphi 0, %s53
      %s55 = sphi 0, %s53
      %s56 = sphi 0, %s55
      %s70 = sphi 0, %s56
      %s74 = sphi 0, %s74
      %s76 = sphi 0, %s74
      %s77 = sphi 0, %s76
      %s91 = sphi 0, %s77
      %s95 = sphi 0, %s95
      %s97 = sphi 0, %s95
      %s98 = sphi 0, %s97
      %s112 = sphi 0, %s98
      %s116 = sphi 0, %s116
      %s118 = sphi 0, %s116
      %s119 = sphi 0, %s118
      %s133 = sphi 0, %s119
      %s139 = sphi 0, %s141
      %s142 = sphi 0, %s139
      %s143 = sphi 0, %s142
      %s159 = sphi 0, %s143
    $region4: #{temporal_attention.1} parent=1 // loop_header_branch
      %22 = sbr.rel (%p20) target = $region8
    $region5: #{temporal_attention.1} parent=1 // loop_body
      %s24 = ssub.s32 %s19, 1
      %s25 = ssub.s32 %s19, 2
      %s26 = sadd.s32 %s19, 1
      %s27 = ssub.s32 %s19, %s26
      %p28 = scmp.eq.s32.totalorder %s27, 0
      %s30 = sadd.s32 %s29, 1
      %s31 = scalar_select %p28, %s29, %s30
      %p34 = pneg %p28
      %p35 = scmp.eq.s32.totalorder %s19, 1
      %p36 = por %p34, %p35
      %p37 = scmp.ne.s32.totalorder %s29, %s32
      %p38 = scmp.eq.s32.totalorder %s19, 0
      %p39 = por %p37, %p38
      %p40 = scmp.ne.s32.totalorder %s29, %s32
      %p41 = scmp.eq.s32.totalorder %s24, 1
      %p42 = por %p40, %p41
      %p43 = scmp.ne.s32.totalorder %s32, %s33
      %p44 = scmp.eq.s32.totalorder %s24, 0
      %p45 = por %p43, %p44
      %p46 = scmp.ne.s32.totalorder %s32, %s33
      %p47 = scmp.eq.s32.totalorder %s25, 1
      %p48 = por %p46, %p47
      %p50 = scmp.ne.s32.totalorder %s33, %s49
      %p51 = scmp.eq.s32.totalorder %s25, 0
      %p52 = por %p50, %p51
      %s54 = sadd.s32 %s53, 1
      %p57 = scmp.eq.s32.totalorder %s19, 1
      %p58 = scmp.ne.s32.totalorder %s53, %s55
      %p59 = scmp.eq.s32.totalorder %s19, 0
      %p60 = por %p58, %p59
      %p61 = scmp.ne.s32.totalorder %s53, %s55
      %p62 = scmp.eq.s32.totalorder %s24, 1
      %p63 = por %p61, %p62
      %p64 = scmp.ne.s32.totalorder %s55, %s56
      %p65 = scmp.eq.s32.totalorder %s24, 0
      %p66 = por %p64, %p65
      %p67 = scmp.ne.s32.totalorder %s55, %s56
      %p68 = scmp.eq.s32.totalorder %s25, 1
      %p69 = por %p67, %p68
      %p71 = scmp.ne.s32.totalorder %s56, %s70
      %p72 = scmp.eq.s32.totalorder %s25, 0
      %p73 = por %p71, %p72
      %s75 = sadd.s32 %s74, 1
      %p78 = scmp.eq.s32.totalorder %s19, 1
      %p79 = scmp.ne.s32.totalorder %s74, %s76
      %p80 = scmp.eq.s32.totalorder %s19, 0
      %p81 = por %p79, %p80
      %p82 = scmp.ne.s32.totalorder %s74, %s76
      %p83 = scmp.eq.s32.totalorder %s24, 1
      %p84 = por %p82, %p83
      %p85 = scmp.ne.s32.totalorder %s76, %s77
      %p86 = scmp.eq.s32.totalorder %s24, 0
      %p87 = por %p85, %p86
      %p88 = scmp.ne.s32.totalorder %s76, %s77
      %p89 = scmp.eq.s32.totalorder %s25, 1
      %p90 = por %p88, %p89
      %p92 = scmp.ne.s32.totalorder %s77, %s91
      %p93 = scmp.eq.s32.totalorder %s25, 0
      %p94 = por %p92, %p93
      %s96 = sadd.s32 %s95, 1
      %p99 = scmp.eq.s32.totalorder %s19, 1
      %p100 = scmp.ne.s32.totalorder %s95, %s97
      %p101 = scmp.eq.s32.totalorder %s19, 0
      %p102 = por %p100, %p101
      %p103 = scmp.ne.s32.totalorder %s95, %s97
      %p104 = scmp.eq.s32.totalorder %s24, 1
      %p105 = por %p103, %p104
      %p106 = scmp.ne.s32.totalorder %s97, %s98
      %p107 = scmp.eq.s32.totalorder %s24, 0
      %p108 = por %p106, %p107
      %p109 = scmp.ne.s32.totalorder %s97, %s98
      %p110 = scmp.eq.s32.totalorder %s25, 1
      %p111 = por %p109, %p110
      %p113 = scmp.ne.s32.totalorder %s98, %s112
      %p114 = scmp.eq.s32.totalorder %s25, 0
      %p115 = por %p113, %p114
      %s117 = sadd.s32 %s116, 1
      %p120 = scmp.eq.s32.totalorder %s19, 1
      %p121 = scmp.ne.s32.totalorder %s116, %s118
      %p122 = scmp.eq.s32.totalorder %s19, 0
      %p123 = por %p121, %p122
      %p124 = scmp.ne.s32.totalorder %s116, %s118
      %p125 = scmp.eq.s32.totalorder %s24, 1
      %p126 = por %p124, %p125
      %p127 = scmp.ne.s32.totalorder %s118, %s119
      %p128 = scmp.eq.s32.totalorder %s24, 0
      %p129 = por %p127, %p128
      %p130 = scmp.ne.s32.totalorder %s118, %s119
      %p131 = scmp.eq.s32.totalorder %s25, 1
      %p132 = por %p130, %p131
      %p134 = scmp.ne.s32.totalorder %s119, %s133
      %p135 = scmp.eq.s32.totalorder %s25, 0
      %p136 = por %p134, %p135
      %s137 = ssub.s32 %s19, %s26
      %p138 = scmp.eq.s32.totalorder %s137, 0
      %s140 = sadd.s32 %s139, 1
      %s141 = scalar_select %p138, %s139, %s140
      %p144 = pneg %p138
      %p145 = scmp.eq.s32.totalorder %s19, 1
      %p146 = por %p144, %p145
      %p147 = scmp.ne.s32.totalorder %s139, %s142
      %p148 = scmp.eq.s32.totalorder %s19, 0
      %p149 = por %p147, %p148
      %p150 = scmp.ne.s32.totalorder %s139, %s142
      %p151 = scmp.eq.s32.totalorder %s24, 1
      %p152 = por %p150, %p151
      %p153 = scmp.ne.s32.totalorder %s142, %s143
      %p154 = scmp.eq.s32.totalorder %s24, 0
      %p155 = por %p153, %p154
      %p156 = scmp.ne.s32.totalorder %s142, %s143
      %p157 = scmp.eq.s32.totalorder %s25, 1
      %p158 = por %p156, %p157
      %p160 = scmp.ne.s32.totalorder %s143, %s159
      %p161 = scmp.eq.s32.totalorder %s25, 0
      %p162 = por %p160, %p161
      %p163 = scmp.le.s32.totalorder 1, %s19
      %p164 = scmp.lt.s32.totalorder %s19, 3
      %p165 = pnand %p163, %p164
      %p166 = pneg %p165
      // Predicated region
      $region9: #{temporal_attention.1} parent=5 // pred_check
        _
      $region10: #{temporal_attention.1} parent=5 // pred_check_branch
        %168 = sbr.rel (%p165) target = $region12
      $region11: #{temporal_attention.1} parent=5 // pred_region
        %s169 = ssub.s32 %s19, 1
        // Predicated region
        $region13: #{temporal_attention.1} parent=11 // pred_check
          %p170 = pneg %p66
        $region14: #{temporal_attention.1} parent=11 // pred_check_branch
          %172 = sbr.rel (%p170) target = $region16
        $region15: #{temporal_attention.1} parent=11 // pred_region
          %s174 = ssub.s32 512, 512
          %175 = vsyncadd [#allocation6], %s174
          %s176 = sshll.u32 [#allocation5], 4
          %s177 = int_to_ptr.vmem [resolvable:$true] %s176
          %182 = dma.hbm_to_vmem [thread:$0]  %s1, 512, %s177, [#allocation6], 128, 128, 8
        $region16: #{temporal_attention.1} parent=11 // pred_fallthru
          _
        // Predicated region
        $region17: #{temporal_attention.1} parent=11 // pred_check
          %p183 = pneg %p87
        $region18: #{temporal_attention.1} parent=11 // pred_check_branch
          %185 = sbr.rel (%p183) target = $region20
        $region19: #{temporal_attention.1} parent=11 // pred_region
          %s187 = ssub.s32 512, 512
          %188 = vsyncadd [#allocation6], %s187
          %s189 = sshll.u32 [#allocation7], 4
          %s190 = int_to_ptr.vmem [resolvable:$true] %s189
          %195 = dma.hbm_to_vmem [thread:$0]  %s2, 512, %s190, [#allocation6], 64, 64, 4
        $region20: #{temporal_attention.1} parent=11 // pred_fallthru
          _
        // Predicated region
        $region21: #{temporal_attention.1} parent=11 // pred_check
          %p196 = pneg %p108
        $region22: #{temporal_attention.1} parent=11 // pred_check_branch
          %198 = sbr.rel (%p196) target = $region24
        $region23: #{temporal_attention.1} parent=11 // pred_region
          %s200 = ssub.s32 16, 16
          %201 = vsyncadd [#allocation9], %s200
          %s203 = sshll.u32 [#allocation8], 4
          %s204 = int_to_ptr.vmem [resolvable:$true] %s203
          %206 = dma.hbm_to_vmem [thread:$0]  %s3, 16, %s204, [#allocation9]
        $region24: #{temporal_attention.1} parent=11 // pred_fallthru
          _
        // Predicated region
        $region25: #{temporal_attention.1} parent=11 // pred_check
          %p207 = pneg %p129
        $region26: #{temporal_attention.1} parent=11 // pred_check_branch
          %209 = sbr.rel (%p207) target = $region28
        $region27: #{temporal_attention.1} parent=11 // pred_region
          %s211 = ssub.s32 2048, 2048
          %212 = vsyncadd [#allocation9], %s211
          %s213 = sshll.u32 [#allocation10], 4
          %s214 = int_to_ptr.vmem [resolvable:$true] %s213
          %219 = dma.hbm_to_vmem [thread:$0]  %s4, 2048, %s214, [#allocation9], 128, 128, 8
        $region28: #{temporal_attention.1} parent=11 // pred_fallthru
          _
      $region12: #{temporal_attention.1} parent=5 // pred_fallthru
        _
      %p220 = scmp.lt.s32.totalorder %s19, 2
      // Predicated region
      $region29: #{temporal_attention.1} parent=5 // pred_check
        %p221 = pneg %p220
      $region30: #{temporal_attention.1} parent=5 // pred_check_branch
        %223 = sbr.rel (%p221) target = $region32
      $region31: #{temporal_attention.1} parent=5 // pred_region
        // Predicated region
        $region33: #{temporal_attention.1} parent=31 // pred_check
          %p224 = pneg %p39
        $region34: #{temporal_attention.1} parent=31 // pred_check_branch
          %226 = sbr.rel (%p224) target = $region36
        $region35: #{temporal_attention.1} parent=31 // pred_region
          %s227 = sand.u32 %s29, 1
          %s228 = scalar_lea.sflag [#allocation3], %s227
          %s229 = sand.u32 %s29, 1
          %s230 = smul.addr %s229, 8
          %s231 = scalar_lea.vmem [#allocation2], %s230
          %s233 = ssub.s32 128, 128
          %234 = vsyncadd %s228, %s233
          %s235 = smul.addr %s19, 2
          %s236 = smul.addr %s235, 64
          %s237 = scalar_lea.hbm %s0, %s236
          %s238 = sshll.u32 %s231, 4
          %s239 = int_to_ptr.vmem [resolvable:$true] %s238
          %244 = dma.hbm_to_vmem [thread:$0]  %s237, 128, %s239, %s228, 64, 64, 4
        $region36: #{temporal_attention.1} parent=31 // pred_fallthru
          _
      $region32: #{temporal_attention.1} parent=5 // pred_fallthru
        _
      %p245 = scmp.le.s32.totalorder 1, %s19
      %p246 = scmp.lt.s32.totalorder %s19, 3
      %p247 = pnand %p245, %p246
      %p248 = pneg %p247
      // Predicated region
      $region37: #{temporal_attention.1} parent=5 // pred_check
        _
      $region38: #{temporal_attention.1} parent=5 // pred_check_branch
        %250 = sbr.rel (%p247) target = $region40
      $region39: #{temporal_attention.1} parent=5 // pred_region
        %s251 = ssub.s32 %s19, 1
        %s252 = sand.u32 %s32, 1
        %s253 = scalar_lea.sflag [#allocation3], %s252
        %s254 = sand.u32 %s32, 1
        %s255 = smul.addr %s254, 8
        %s256 = scalar_lea.vmem [#allocation2], %s255
        // Predicated region
        $region41: #{temporal_attention.1} parent=39 // pred_check
          %p257 = pneg %p45
        $region42: #{temporal_attention.1} parent=39 // pred_check_branch
          %259 = sbr.rel (%p257) target = $region44
        $region43: #{temporal_attention.1} parent=39 // pred_region
          %260 = dma.done %s253, 128
        $region44: #{temporal_attention.1} parent=39 // pred_fallthru
          _
        // Predicated region
        $region45: #{temporal_attention.1} parent=39 // pred_check
          %p261 = pneg %p66
        $region46: #{temporal_attention.1} parent=39 // pred_check_branch
          %263 = sbr.rel (%p261) target = $region48
        $region47: #{temporal_attention.1} parent=39 // pred_region
          %264 = dma.done [#allocation6], 512
        $region48: #{temporal_attention.1} parent=39 // pred_fallthru
          _
        // Predicated region
        $region49: #{temporal_attention.1} parent=39 // pred_check
          %p265 = pneg %p87
        $region50: #{temporal_attention.1} parent=39 // pred_check_branch
          %267 = sbr.rel (%p265) target = $region52
        $region51: #{temporal_attention.1} parent=39 // pred_region
          %268 = dma.done [#allocation6], 512
        $region52: #{temporal_attention.1} parent=39 // pred_fallthru
          _
        // Predicated region
        $region53: #{temporal_attention.1} parent=39 // pred_check
          %p269 = pneg %p108
        $region54: #{temporal_attention.1} parent=39 // pred_check_branch
          %271 = sbr.rel (%p269) target = $region56
        $region55: #{temporal_attention.1} parent=39 // pred_region
          %272 = dma.done [#allocation9], 16
        $region56: #{temporal_attention.1} parent=39 // pred_fallthru
          _
        // Predicated region
        $region57: #{temporal_attention.1} parent=39 // pred_check
          %p273 = pneg %p129
        $region58: #{temporal_attention.1} parent=39 // pred_check_branch
          %275 = sbr.rel (%p273) target = $region60
        $region59: #{temporal_attention.1} parent=39 // pred_region
          %276 = dma.done [#allocation9], 2048
        $region60: #{temporal_attention.1} parent=39 // pred_fallthru
          _
        %s277 = sand.u32 %s32, 1
        %s278 = scalar_lea.sflag [#allocation3], %s277
        %s279 = sand.u32 %s32, 1
        %s280 = smul.addr %s279, 8
        %s281 = scalar_lea.vmem [#allocation2], %s280
        %p282 = pneg %p45
        %p283 = pneg %p42
        %p284 = pneg %p66
        %p285 = pneg %p63
        %p286 = pneg %p87
        %p287 = pneg %p84
        %p288 = pneg %p108
        %p289 = pneg %p105
        %p290 = pneg %p129
        %p291 = pneg %p126
        %p292 = pneg %p155
        %p293 = pneg %p152
        %s294 = sand.u32 %s142, 1
        %s295 = scalar_lea.sflag [#allocation4], %s294
        %s296 = sand.u32 %s142, 1
        %s297 = smul.addr %s296, 16
        %s298 = scalar_lea.vmem [#allocation11], %s297
        %v300 = vld [vmem:[%s256] sm:$0xf]
        %v301 = vld [vmem:[%s256 + $0x4] sm:$0xf]
        %v302 = vld [vmem:[#allocation5] sm:$0xff]
        %v303 = vld [vmem:[#allocation5 + $0x8] sm:$0xff]
        %v304 = vld [vmem:[#allocation5 + $0x10] sm:$0xff]
        %v305 = vld [vmem:[#allocation5 + $0x18] sm:$0xff]
        %v308 = vunpack.c.l.b16 %v300
        %v309 = vunpack.c.l.b16 %v301
        %v310 = vpack.c.b16 %v309, %v308
        %v315 = vunpack.c.l.b16 %v302
        %v316 = vunpack.c.h.b16 %v302
        %v317 = vunpack.c.l.b16 %v303
        %v318 = vunpack.c.h.b16 %v303
        %v319 = vunpack.c.l.b16 %v304
        %v320 = vunpack.c.h.b16 %v304
        %v321 = vunpack.c.l.b16 %v305
        %v322 = vunpack.c.h.b16 %v305
        %v323 = vpack.c.b16 %v317, %v315
        %v324 = vpack.c.b16 %v318, %v316
        %v325 = vpack.c.b16 %v321, %v319
        %v326 = vpack.c.b16 %v322, %v320
        %vm331 = vcmask 261120
        %v333 = vsel %vm331, %v310, 0
        %335 = vmatprep.subr.bf16.mxu0 %v324
        %336 = vmatpush1.bf16.msra.mxu0 %v323
        %337 = vmatprep.subr.bf16.mxu0 %v326
        %338 = vmatpush1.bf16.msra.mxu0 %v325
        %339 = vmatprep.subr.bf16.mxu0 0
        %340 = vmatpush1.bf16.msra.mxu0 0
        %341 = vmatprep.subr.bf16.mxu0 0
        %342 = vmatpush1.bf16.msra.mxu0 0
        %343 = vmatprep.subr.bf16.mxu0 0
        %344 = vmatpush1.bf16.msra.mxu0 0
        %345 = vmatprep.subr.bf16.mxu0 0
        %346 = vmatpush1.bf16.msra.mxu0 0
        %347 = vmatprep.subr.bf16.mxu0 0
        %348 = vmatpush1.bf16.msra.mxu0 0
        %349 = vmatprep.subr.bf16.mxu0 0
        %350 = vmatpush1.bf16.msra.mxu0 0
        %351 = vmatprep.subr.bf16.mxu0 0
        %352 = vmatpush1.bf16.msra.mxu0 0
        %353 = vmatprep.subr.bf16.mxu0 0
        %354 = vmatpush1.bf16.msra.mxu0 0
        %355 = vmatprep.subr.bf16.mxu0 0
        %356 = vmatpush1.bf16.msra.mxu0 0
        %357 = vmatprep.subr.bf16.mxu0 0
        %358 = vmatpush1.bf16.msra.mxu0 0
        %359 = vmatprep.subr.bf16.mxu0 0
        %360 = vmatpush1.bf16.msra.mxu0 0
        %361 = vmatprep.subr.bf16.mxu0 0
        %362 = vmatpush1.bf16.msra.mxu0 0
        %363 = vmatprep.subr.bf16.mxu0 0
        %364 = vmatpush1.bf16.msra.mxu0 0
        %365 = vmatprep.subr.bf16.mxu0 0
        %366 = vmatpush1.bf16.msra.mxu0 0
        %367 = vmatprep.mubr.bf16.mxu0 0
        %368 = vmatmul.mubr.bf16.gmra.mrb[0].mxu0 %v333
        %v369 = vpop.f32.mrb[0].mxu0
        %v370 = vadd.f32 0.0, %v369
        %v371 = vpop.f32.mrb[0].mxu0
        %v372 = vadd.f32 0.0, %v371
        %v373 = vpop.f32.mrb[0].mxu0
        %v374 = vadd.f32 0.0, %v373
        %v375 = vpop.f32.mrb[0].mxu0
        %v376 = vadd.f32 0.0, %v375
        %377 = vdwg.mxu0
        %v378 = vmul.f32 %v370, 0.35355338
        %v379 = vmul.f32 %v374, 0.35355338
        %v380 = vld [vmem:[#allocation10] sm:$0xff]
        %v381 = vld [vmem:[#allocation10 + $0x8] sm:$0xff]
        %384 = vrot.lane.b32.xlu0 %v370, 64
        %v385 = vpop.permute.xlu0 %384
        %386 = vrot.lane.b32.xlu0 %v374, 64
        %v387 = vpop.permute.xlu0 %386
        %vm388 = vcmask 64512
        %v390 = vsel %vm388, %v378, 0
        %v393 = vsel %vm388, %v379, 0
        %v395 = vsel %vm388, %v385, 0
        %v397 = vsel %vm388, %v387, 0
        %399 = vmatprep.subr.mxu0 0.0
        %400 = vmatpush1.xpose.msra.mxu0 %v395
        %401 = vmatprep.subr.mxu0 0.0
        %402 = vmatpush1.xpose.msra.mxu0 %v397
        %403 = vmatprep.subr.mxu0 0.0
        %404 = vmatpush1.xpose.msra.mxu0 0.0
        %405 = vmatprep.subr.mxu0 0.0
        %406 = vmatpush1.xpose.msra.mxu0 0.0
        %407 = vmatprep.subr.mxu0 0.0
        %408 = vmatpush1.xpose.msra.mxu0 0.0
        %409 = vmatprep.subr.mxu0 0.0
        %410 = vmatpush1.xpose.msra.mxu0 0.0
        %411 = vmatprep.subr.mxu0 0.0
        %412 = vmatpush1.xpose.msra.mxu0 0.0
        %413 = vmatprep.subr.mxu0 0.0
        %414 = vmatpush1.xpose.msra.mxu0 0.0
        %415 = vmatprep.subr.mxu0 0.0
        %416 = vmatpush1.xpose.msra.mxu0 0.0
        %417 = vmatprep.subr.mxu0 0.0
        %418 = vmatpush1.xpose.msra.mxu0 0.0
        %419 = vmatprep.subr.mxu0 0.0
        %420 = vmatpush1.xpose.msra.mxu0 0.0
        %421 = vmatprep.subr.mxu0 0.0
        %422 = vmatpush1.xpose.msra.mxu0 0.0
        %423 = vmatprep.subr.mxu0 0.0
        %424 = vmatpush1.xpose.msra.mxu0 0.0
        %425 = vmatprep.subr.mxu0 0.0
        %426 = vmatpush1.xpose.msra.mxu0 0.0
        %427 = vmatprep.subr.mxu0 0.0
        %428 = vmatpush1.xpose.msra.mxu0 0.0
        %429 = vmatprep.subr.mxu0 0.0
        %430 = vmatpush1.xpose.msra.mxu0 0.0
        %431 = vmatprep.subr.mxu0 0.0
        %432 = vmatpush1.xpose.msra.mxu0 0.0
        %433 = vmatprep.subr.mxu0 0.0
        %434 = vmatpush1.xpose.msra.mxu0 0.0
        %435 = vmatprep.subr.mxu0 0.0
        %436 = vmatpush1.xpose.msra.mxu0 0.0
        %437 = vmatprep.subr.mxu0 0.0
        %438 = vmatpush1.xpose.msra.mxu0 0.0
        %439 = vmatprep.subr.mxu0 0.0
        %440 = vmatpush1.xpose.msra.mxu0 0.0
        %441 = vmatprep.subr.mxu0 0.0
        %442 = vmatpush1.xpose.msra.mxu0 0.0
        %443 = vmatprep.subr.mxu0 0.0
        %444 = vmatpush1.xpose.msra.mxu0 0.0
        %445 = vmatprep.subr.mxu0 0.0
        %446 = vmatpush1.xpose.msra.mxu0 0.0
        %447 = vmatprep.subr.mxu0 0.0
        %448 = vmatpush1.xpose.msra.mxu0 0.0
        %449 = vmatprep.subr.mxu0 0.0
        %450 = vmatpush1.xpose.msra.mxu0 0.0
        %451 = vmatprep.subr.mxu0 0.0
        %452 = vmatpush1.xpose.msra.mxu0 0.0
        %453 = vmatprep.subr.mxu0 0.0
        %454 = vmatpush1.xpose.msra.mxu0 0.0
        %455 = vmatprep.subr.mxu0 0.0
        %456 = vmatpush1.xpose.msra.mxu0 0.0
        %457 = vmatprep.subr.mxu0 0.0
        %458 = vmatpush1.xpose.msra.mxu0 0.0
        %459 = vmatprep.subr.mxu0 0.0
        %460 = vmatpush1.xpose.msra.mxu0 0.0
        %461 = vmatprep.subr.mxu0 0.0
        %462 = vmatpush1.xpose.msra.mxu0 0.0
        %463 = vmatprep.mubr.f32.mxu0 0.0
        %464 = vmatmul.mubr.f32.gmra.mrb[0].mxu0 %v390
        %v465 = vpop.f32.mrb[0].mxu0
        %v466 = vadd.f32 %v380, %v465
        %v467 = vpop.f32.mrb[0].mxu0
        %468 = vmatprep.mubr.f32.mxu0 0.0
        %469 = vmatmul.mubr.f32.gmra.mrb[0].mxu0 %v393
        %v470 = vpop.f32.mrb[0].mxu0
        %v471 = vadd.f32 %v381, %v470
        %v472 = vpop.f32.mrb[0].mxu0
        %473 = vdwg.mxu0
        %vm474 = vcmask 130048
        %v475 = vsel %vm474, %v466, -inf
        %476 = vmax.xlane.f32.xlu0 %v475
        %v477 = vpop.xlane.xlu0 %476
        %v478 = vsel %vm474, %v471, -inf
        %479 = vmax.xlane.f32.xlu0 %v478
        %v480 = vpop.xlane.xlu0 %479
        %v481 = vsub.f32 %v466, %v477
        %v482 = vsub.f32 %v471, %v480
        %v483 = vmul.f32 %v481, 1.442695
        %v484 = vpow.pop %v483
        %v485 = vmul.f32 %v482, 1.442695
        %v486 = vpow.pop %v485
        %v487 = vsel %vm474, %v484, 0.0
        %488 = vadd.xlane.f32.xlu0 %v487
        %v489 = vpop.xlane.xlu0 %488
        %v490 = vsel %vm474, %v486, 0.0
        %491 = vadd.xlane.f32.xlu0 %v490
        %v492 = vpop.xlane.xlu0 %491
        %v493 = vrcp.pop %v489
        %v494 = vrcp.pop %v492
        %v495 = vmul.f32 %v484, %v493
        %v496 = vmul.f32 %v486, %v494
        %v498 = vsel %vm474, %v495, 0
        %v501 = vsel %vm474, %v496, 0
        %503 = vmatprep.subr.mxu0 0.0
        %504 = vmatpush1.msra.mxu0 %v372
        %505 = vmatprep.subr.mxu0 0.0
        %506 = vmatpush1.msra.mxu0 %v376
        %507 = vmatprep.subr.mxu0 0.0
        %508 = vmatpush1.msra.mxu0 0.0
        %509 = vmatprep.subr.mxu0 0.0
        %510 = vmatpush1.msra.mxu0 0.0
        %511 = vmatprep.subr.mxu0 0.0
        %512 = vmatpush1.msra.mxu0 0.0
        %513 = vmatprep.subr.mxu0 0.0
        %514 = vmatpush1.msra.mxu0 0.0
        %515 = vmatprep.subr.mxu0 0.0
        %516 = vmatpush1.msra.mxu0 0.0
        %517 = vmatprep.subr.mxu0 0.0
        %518 = vmatpush1.msra.mxu0 0.0
        %519 = vmatprep.subr.mxu0 0.0
        %520 = vmatpush1.msra.mxu0 0.0
        %521 = vmatprep.subr.mxu0 0.0
        %522 = vmatpush1.msra.mxu0 0.0
        %523 = vmatprep.subr.mxu0 0.0
        %524 = vmatpush1.msra.mxu0 0.0
        %525 = vmatprep.subr.mxu0 0.0
        %526 = vmatpush1.msra.mxu0 0.0
        %527 = vmatprep.subr.mxu0 0.0
        %528 = vmatpush1.msra.mxu0 0.0
        %529 = vmatprep.subr.mxu0 0.0
        %530 = vmatpush1.msra.mxu0 0.0
        %531 = vmatprep.subr.mxu0 0.0
        %532 = vmatpush1.msra.mxu0 0.0
        %533 = vmatprep.subr.mxu0 0.0
        %534 = vmatpush1.msra.mxu0 0.0
        %535 = vmatprep.subr.mxu0 0.0
        %536 = vmatpush1.msra.mxu0 0.0
        %537 = vmatprep.subr.mxu0 0.0
        %538 = vmatpush1.msra.mxu0 0.0
        %539 = vmatprep.subr.mxu0 0.0
        %540 = vmatpush1.msra.mxu0 0.0
        %541 = vmatprep.subr.mxu0 0.0
        %542 = vmatpush1.msra.mxu0 0.0
        %543 = vmatprep.subr.mxu0 0.0
        %544 = vmatpush1.msra.mxu0 0.0
        %545 = vmatprep.subr.mxu0 0.0
        %546 = vmatpush1.msra.mxu0 0.0
        %547 = vmatprep.subr.mxu0 0.0
        %548 = vmatpush1.msra.mxu0 0.0
        %549 = vmatprep.subr.mxu0 0.0
        %550 = vmatpush1.msra.mxu0 0.0
        %551 = vmatprep.subr.mxu0 0.0
        %552 = vmatpush1.msra.mxu0 0.0
        %553 = vmatprep.subr.mxu0 0.0
        %554 = vmatpush1.msra.mxu0 0.0
        %555 = vmatprep.subr.mxu0 0.0
        %556 = vmatpush1.msra.mxu0 0.0
        %557 = vmatprep.subr.mxu0 0.0
        %558 = vmatpush1.msra.mxu0 0.0
        %559 = vmatprep.subr.mxu0 0.0
        %560 = vmatpush1.msra.mxu0 0.0
        %561 = vmatprep.subr.mxu0 0.0
        %562 = vmatpush1.msra.mxu0 0.0
        %563 = vmatprep.subr.mxu0 0.0
        %564 = vmatpush1.msra.mxu0 0.0
        %565 = vmatprep.subr.mxu0 0.0
        %566 = vmatpush1.msra.mxu0 0.0
        %567 = vmatprep.mubr.f32.mxu0 0.0
        %568 = vmatmul.mubr.f32.gmra.mrb[0].mxu0 %v498
        %v569 = vpop.f32.mrb[0].mxu0
        %v570 = vadd.f32 0.0, %v569
        %v571 = vpop.f32.mrb[0].mxu0
        %572 = vmatprep.mubr.f32.mxu0 0.0
        %573 = vmatmul.mubr.f32.gmra.mrb[0].mxu0 %v501
        %v574 = vpop.f32.mrb[0].mxu0
        %v575 = vadd.f32 0.0, %v574
        %v576 = vpop.f32.mrb[0].mxu0
        %577 = vdwg.mxu0
        %s578 = scalar_lea.vmem [#allocation10], 16
        %v579 = vld [vmem:[%s578] sm:$0xff]
        %v580 = vld [vmem:[%s578 + $0x8] sm:$0xff]
        %581 = vrot.lane.b32.xlu0 %v378, 120
        %v582 = vpop.permute.xlu0 %581
        %583 = vrot.lane.b32.xlu0 %v379, 120
        %v584 = vpop.permute.xlu0 %583
        %585 = vrot.lane.b32.xlu0 %v370, 56
        %v586 = vpop.permute.xlu0 %585
        %587 = vrot.lane.b32.xlu0 %v374, 56
        %v588 = vpop.permute.xlu0 %587
        %v589 = vsel %vm388, %v582, 0
        %v591 = vsel %vm388, %v584, 0
        %v593 = vsel %vm388, %v586, 0
        %v595 = vsel %vm388, %v588, 0
        %597 = vmatprep.subr.mxu0 0.0
        %598 = vmatpush1.xpose.msra.mxu0 %v593
        %599 = vmatprep.subr.mxu0 0.0
        %600 = vmatpush1.xpose.msra.mxu0 %v595
        %601 = vmatprep.subr.mxu0 0.0
        %602 = vmatpush1.xpose.msra.mxu0 0.0
        %603 = vmatprep.subr.mxu0 0.0
        %604 = vmatpush1.xpose.msra.mxu0 0.0
        %605 = vmatprep.subr.mxu0 0.0
        %606 = vmatpush1.xpose.msra.mxu0 0.0
        %607 = vmatprep.subr.mxu0 0.0
        %608 = vmatpush1.xpose.msra.mxu0 0.0
        %609 = vmatprep.subr.mxu0 0.0
        %610 = vmatpush1.xpose.msra.mxu0 0.0
        %611 = vmatprep.subr.mxu0 0.0
        %612 = vmatpush1.xpose.msra.mxu0 0.0
        %613 = vmatprep.subr.mxu0 0.0
        %614 = vmatpush1.xpose.msra.mxu0 0.0
        %615 = vmatprep.subr.mxu0 0.0
        %616 = vmatpush1.xpose.msra.mxu0 0.0
        %617 = vmatprep.subr.mxu0 0.0
        %618 = vmatpush1.xpose.msra.mxu0 0.0
        %619 = vmatprep.subr.mxu0 0.0
        %620 = vmatpush1.xpose.msra.mxu0 0.0
        %621 = vmatprep.subr.mxu0 0.0
        %622 = vmatpush1.xpose.msra.mxu0 0.0
        %623 = vmatprep.subr.mxu0 0.0
        %624 = vmatpush1.xpose.msra.mxu0 0.0
        %625 = vmatprep.subr.mxu0 0.0
        %626 = vmatpush1.xpose.msra.mxu0 0.0
        %627 = vmatprep.subr.mxu0 0.0
        %628 = vmatpush1.xpose.msra.mxu0 0.0
        %629 = vmatprep.subr.mxu0 0.0
        %630 = vmatpush1.xpose.msra.mxu0 0.0
        %631 = vmatprep.subr.mxu0 0.0
        %632 = vmatpush1.xpose.msra.mxu0 0.0
        %633 = vmatprep.subr.mxu0 0.0
        %634 = vmatpush1.xpose.msra.mxu0 0.0
        %635 = vmatprep.subr.mxu0 0.0
        %636 = vmatpush1.xpose.msra.mxu0 0.0
        %637 = vmatprep.subr.mxu0 0.0
        %638 = vmatpush1.xpose.msra.mxu0 0.0
        %639 = vmatprep.subr.mxu0 0.0
        %640 = vmatpush1.xpose.msra.mxu0 0.0
        %641 = vmatprep.subr.mxu0 0.0
        %642 = vmatpush1.xpose.msra.mxu0 0.0
        %643 = vmatprep.subr.mxu0 0.0
        %644 = vmatpush1.xpose.msra.mxu0 0.0
        %645 = vmatprep.subr.mxu0 0.0
        %646 = vmatpush1.xpose.msra.mxu0 0.0
        %647 = vmatprep.subr.mxu0 0.0
        %648 = vmatpush1.xpose.msra.mxu0 0.0
        %649 = vmatprep.subr.mxu0 0.0
        %650 = vmatpush1.xpose.msra.mxu0 0.0
        %651 = vmatprep.subr.mxu0 0.0
        %652 = vmatpush1.xpose.msra.mxu0 0.0
        %653 = vmatprep.subr.mxu0 0.0
        %654 = vmatpush1.xpose.msra.mxu0 0.0
        %655 = vmatprep.subr.mxu0 0.0
        %656 = vmatpush1.xpose.msra.mxu0 0.0
        %657 = vmatprep.subr.mxu0 0.0
        %658 = vmatpush1.xpose.msra.mxu0 0.0
        %659 = vmatprep.subr.mxu0 0.0
        %660 = vmatpush1.xpose.msra.mxu0 0.0
        %661 = vmatprep.mubr.f32.mxu0 0.0
        %662 = vmatmul.mubr.f32.gmra.mrb[0].mxu0 %v589
        %v663 = vpop.f32.mrb[0].mxu0
        %v664 = vadd.f32 %v579, %v663
        %v665 = vpop.f32.mrb[0].mxu0
        %666 = vmatprep.mubr.f32.mxu0 0.0
        %667 = vmatmul.mubr.f32.gmra.mrb[0].mxu0 %v591
        %v668 = vpop.f32.mrb[0].mxu0
        %v669 = vadd.f32 %v580, %v668
        %v670 = vpop.f32.mrb[0].mxu0
        %671 = vdwg.mxu0
        %v672 = vsel %vm474, %v664, -inf
        %673 = vmax.xlane.f32.xlu0 %v672
        %v674 = vpop.xlane.xlu0 %673
        %v675 = vsel %vm474, %v669, -inf
        %676 = vmax.xlane.f32.xlu0 %v675
        %v677 = vpop.xlane.xlu0 %676
        %v678 = vsub.f32 %v664, %v674
        %v679 = vsub.f32 %v669, %v677
        %v680 = vmul.f32 %v678, 1.442695
        %v681 = vpow.pop %v680
        %v682 = vmul.f32 %v679, 1.442695
        %v683 = vpow.pop %v682
        %v684 = vsel %vm474, %v681, 0.0
        %685 = vadd.xlane.f32.xlu0 %v684
        %v686 = vpop.xlane.xlu0 %685
        %v687 = vsel %vm474, %v683, 0.0
        %688 = vadd.xlane.f32.xlu0 %v687
        %v689 = vpop.xlane.xlu0 %688
        %v690 = vrcp.pop %v686
        %v691 = vrcp.pop %v689
        %v692 = vmul.f32 %v681, %v690
        %v693 = vmul.f32 %v683, %v691
        %696 = vrot.lane.b32.xlu0 %v372, 120
        %v697 = vpop.permute.xlu0 %696
        %698 = vrot.lane.b32.xlu0 %v376, 120
        %v699 = vpop.permute.xlu0 %698
        %v703 = vsel %vm474, %v692, 0
        %v706 = vsel %vm474, %v693, 0
        %708 = vmatprep.subr.mxu0 0.0
        %709 = vmatpush1.msra.mxu0 %v697
        %710 = vmatprep.subr.mxu0 0.0
        %711 = vmatpush1.msra.mxu0 %v699
        %712 = vmatprep.subr.mxu0 0.0
        %713 = vmatpush1.msra.mxu0 0.0
        %714 = vmatprep.subr.mxu0 0.0
        %715 = vmatpush1.msra.mxu0 0.0
        %716 = vmatprep.subr.mxu0 0.0
        %717 = vmatpush1.msra.mxu0 0.0
        %718 = vmatprep.subr.mxu0 0.0
        %719 = vmatpush1.msra.mxu0 0.0
        %720 = vmatprep.subr.mxu0 0.0
        %721 = vmatpush1.msra.mxu0 0.0
        %722 = vmatprep.subr.mxu0 0.0
        %723 = vmatpush1.msra.mxu0 0.0
        %724 = vmatprep.subr.mxu0 0.0
        %725 = vmatpush1.msra.mxu0 0.0
        %726 = vmatprep.subr.mxu0 0.0
        %727 = vmatpush1.msra.mxu0 0.0
        %728 = vmatprep.subr.mxu0 0.0
        %729 = vmatpush1.msra.mxu0 0.0
        %730 = vmatprep.subr.mxu0 0.0
        %731 = vmatpush1.msra.mxu0 0.0
        %732 = vmatprep.subr.mxu0 0.0
        %733 = vmatpush1.msra.mxu0 0.0
        %734 = vmatprep.subr.mxu0 0.0
        %735 = vmatpush1.msra.mxu0 0.0
        %736 = vmatprep.subr.mxu0 0.0
        %737 = vmatpush1.msra.mxu0 0.0
        %738 = vmatprep.subr.mxu0 0.0
        %739 = vmatpush1.msra.mxu0 0.0
        %740 = vmatprep.subr.mxu0 0.0
        %741 = vmatpush1.msra.mxu0 0.0
        %742 = vmatprep.subr.mxu0 0.0
        %743 = vmatpush1.msra.mxu0 0.0
        %744 = vmatprep.subr.mxu0 0.0
        %745 = vmatpush1.msra.mxu0 0.0
        %746 = vmatprep.subr.mxu0 0.0
        %747 = vmatpush1.msra.mxu0 0.0
        %748 = vmatprep.subr.mxu0 0.0
        %749 = vmatpush1.msra.mxu0 0.0
        %750 = vmatprep.subr.mxu0 0.0
        %751 = vmatpush1.msra.mxu0 0.0
        %752 = vmatprep.subr.mxu0 0.0
        %753 = vmatpush1.msra.mxu0 0.0
        %754 = vmatprep.subr.mxu0 0.0
        %755 = vmatpush1.msra.mxu0 0.0
        %756 = vmatprep.subr.mxu0 0.0
        %757 = vmatpush1.msra.mxu0 0.0
        %758 = vmatprep.subr.mxu0 0.0
        %759 = vmatpush1.msra.mxu0 0.0
        %760 = vmatprep.subr.mxu0 0.0
        %761 = vmatpush1.msra.mxu0 0.0
        %762 = vmatprep.subr.mxu0 0.0
        %763 = vmatpush1.msra.mxu0 0.0
        %764 = vmatprep.subr.mxu0 0.0
        %765 = vmatpush1.msra.mxu0 0.0
        %766 = vmatprep.subr.mxu0 0.0
        %767 = vmatpush1.msra.mxu0 0.0
        %768 = vmatprep.subr.mxu0 0.0
        %769 = vmatpush1.msra.mxu0 0.0
        %770 = vmatprep.subr.mxu0 0.0
        %771 = vmatpush1.msra.mxu0 0.0
        %772 = vmatprep.mubr.f32.mxu0 0.0
        %773 = vmatmul.mubr.f32.gmra.mrb[0].mxu0 %v703
        %v774 = vpop.f32.mrb[0].mxu0
        %v775 = vadd.f32 0.0, %v774
        %v776 = vpop.f32.mrb[0].mxu0
        %777 = vmatprep.mubr.f32.mxu0 0.0
        %778 = vmatmul.mubr.f32.gmra.mrb[0].mxu0 %v706
        %v779 = vpop.f32.mrb[0].mxu0
        %v780 = vadd.f32 0.0, %v779
        %v781 = vpop.f32.mrb[0].mxu0
        %782 = vdwg.mxu0
        %s783 = scalar_lea.vmem [#allocation10], 32
        %v784 = vld [vmem:[%s783] sm:$0xff]
        %v785 = vld [vmem:[%s783 + $0x8] sm:$0xff]
        %786 = vrot.lane.b32.xlu0 %v378, 112
        %v787 = vpop.permute.xlu0 %786
        %788 = vrot.lane.b32.xlu0 %v379, 112
        %v789 = vpop.permute.xlu0 %788
        %790 = vrot.lane.b32.xlu0 %v370, 48
        %v791 = vpop.permute.xlu0 %790
        %792 = vrot.lane.b32.xlu0 %v374, 48
        %v793 = vpop.permute.xlu0 %792
        %v794 = vsel %vm388, %v787, 0
        %v796 = vsel %vm388, %v789, 0
        %v798 = vsel %vm388, %v791, 0
        %v800 = vsel %vm388, %v793, 0
        %802 = vmatprep.subr.mxu0 0.0
        %803 = vmatpush1.xpose.msra.mxu0 %v798
        %804 = vmatprep.subr.mxu0 0.0
        %805 = vmatpush1.xpose.msra.mxu0 %v800
        %806 = vmatprep.subr.mxu0 0.0
        %807 = vmatpush1.xpose.msra.mxu0 0.0
        %808 = vmatprep.subr.mxu0 0.0
        %809 = vmatpush1.xpose.msra.mxu0 0.0
        %810 = vmatprep.subr.mxu0 0.0
        %811 = vmatpush1.xpose.msra.mxu0 0.0
        %812 = vmatprep.subr.mxu0 0.0
        %813 = vmatpush1.xpose.msra.mxu0 0.0
        %814 = vmatprep.subr.mxu0 0.0
        %815 = vmatpush1.xpose.msra.mxu0 0.0
        %816 = vmatprep.subr.mxu0 0.0
        %817 = vmatpush1.xpose.msra.mxu0 0.0
        %818 = vmatprep.subr.mxu0 0.0
        %819 = vmatpush1.xpose.msra.mxu0 0.0
        %820 = vmatprep.subr.mxu0 0.0
        %821 = vmatpush1.xpose.msra.mxu0 0.0
        %822 = vmatprep.subr.mxu0 0.0
        %823 = vmatpush1.xpose.msra.mxu0 0.0
        %824 = vmatprep.subr.mxu0 0.0
        %825 = vmatpush1.xpose.msra.mxu0 0.0
        %826 = vmatprep.subr.mxu0 0.0
        %827 = vmatpush1.xpose.msra.mxu0 0.0
        %828 = vmatprep.subr.mxu0 0.0
        %829 = vmatpush1.xpose.msra.mxu0 0.0
        %830 = vmatprep.subr.mxu0 0.0
        %831 = vmatpush1.xpose.msra.mxu0 0.0
        %832 = vmatprep.subr.mxu0 0.0
        %833 = vmatpush1.xpose.msra.mxu0 0.0
        %834 = vmatprep.subr.mxu0 0.0
        %835 = vmatpush1.xpose.msra.mxu0 0.0
        %836 = vmatprep.subr.mxu0 0.0
        %837 = vmatpush1.xpose.msra.mxu0 0.0
        %838 = vmatprep.subr.mxu0 0.0
        %839 = vmatpush1.xpose.msra.mxu0 0.0
        %840 = vmatprep.subr.mxu0 0.0
        %841 = vmatpush1.xpose.msra.mxu0 0.0
        %842 = vmatprep.subr.mxu0 0.0
        %843 = vmatpush1.xpose.msra.mxu0 0.0
        %844 = vmatprep.subr.mxu0 0.0
        %845 = vmatpush1.xpose.msra.mxu0 0.0
        %846 = vmatprep.subr.mxu0 0.0
        %847 = vmatpush1.xpose.msra.mxu0 0.0
        %848 = vmatprep.subr.mxu0 0.0
        %849 = vmatpush1.xpose.msra.mxu0 0.0
        %850 = vmatprep.subr.mxu0 0.0
        %851 = vmatpush1.xpose.msra.mxu0 0.0
        %852 = vmatprep.subr.mxu0 0.0
        %853 = vmatpush1.xpose.msra.mxu0 0.0
        %854 = vmatprep.subr.mxu0 0.0
        %855 = vmatpush1.xpose.msra.mxu0 0.0
        %856 = vmatprep.subr.mxu0 0.0
        %857 = vmatpush1.xpose.msra.mxu0 0.0
        %858 = vmatprep.subr.mxu0 0.0
        %859 = vmatpush1.xpose.msra.mxu0 0.0
        %860 = vmatprep.subr.mxu0 0.0
        %861 = vmatpush1.xpose.msra.mxu0 0.0
        %862 = vmatprep.subr.mxu0 0.0
        %863 = vmatpush1.xpose.msra.mxu0 0.0
        %864 = vmatprep.subr.mxu0 0.0
        %865 = vmatpush1.xpose.msra.mxu0 0.0
        %866 = vmatprep.mubr.f32.mxu0 0.0
        %867 = vmatmul.mubr.f32.gmra.mrb[0].mxu0 %v794
        %v868 = vpop.f32.mrb[0].mxu0
        %v869 = vadd.f32 %v784, %v868
        %v870 = vpop.f32.mrb[0].mxu0
        %871 = vmatprep.mubr.f32.mxu0 0.0
        %872 = vmatmul.mubr.f32.gmra.mrb[0].mxu0 %v796
        %v873 = vpop.f32.mrb[0].mxu0
        %v874 = vadd.f32 %v785, %v873
        %v875 = vpop.f32.mrb[0].mxu0
        %876 = vdwg.mxu0
        %v877 = vsel %vm474, %v869, -inf
        %878 = vmax.xlane.f32.xlu0 %v877
        %v879 = vpop.xlane.xlu0 %878
        %v880 = vsel %vm474, %v874, -inf
        %881 = vmax.xlane.f32.xlu0 %v880
        %v882 = vpop.xlane.xlu0 %881
        %v883 = vsub.f32 %v869, %v879
        %v884 = vsub.f32 %v874, %v882
        %v885 = vmul.f32 %v883, 1.442695
        %v886 = vpow.pop %v885
        %v887 = vmul.f32 %v884, 1.442695
        %v888 = vpow.pop %v887
        %v889 = vsel %vm474, %v886, 0.0
        %890 = vadd.xlane.f32.xlu0 %v889
        %v891 = vpop.xlane.xlu0 %890
        %v892 = vsel %vm474, %v888, 0.0
        %893 = vadd.xlane.f32.xlu0 %v892
        %v894 = vpop.xlane.xlu0 %893
        %v895 = vrcp.pop %v891
        %v896 = vrcp.pop %v894
        %v897 = vmul.f32 %v886, %v895
        %v898 = vmul.f32 %v888, %v896
        %899 = vrot.lane.b32.xlu0 %v372, 112
        %v900 = vpop.permute.xlu0 %899
        %901 = vrot.lane.b32.xlu0 %v376, 112
        %v902 = vpop.permute.xlu0 %901
        %v906 = vsel %vm474, %v897, 0
        %v909 = vsel %vm474, %v898, 0
        %911 = vmatprep.subr.mxu0 0.0
        %912 = vmatpush1.msra.mxu0 %v900
        %913 = vmatprep.subr.mxu0 0.0
        %914 = vmatpush1.msra.mxu0 %v902
        %915 = vmatprep.subr.mxu0 0.0
        %916 = vmatpush1.msra.mxu0 0.0
        %917 = vmatprep.subr.mxu0 0.0
        %918 = vmatpush1.msra.mxu0 0.0
        %919 = vmatprep.subr.mxu0 0.0
        %920 = vmatpush1.msra.mxu0 0.0
        %921 = vmatprep.subr.mxu0 0.0
        %922 = vmatpush1.msra.mxu0 0.0
        %923 = vmatprep.subr.mxu0 0.0
        %924 = vmatpush1.msra.mxu0 0.0
        %925 = vmatprep.subr.mxu0 0.0
        %926 = vmatpush1.msra.mxu0 0.0
        %927 = vmatprep.subr.mxu0 0.0
        %928 = vmatpush1.msra.mxu0 0.0
        %929 = vmatprep.subr.mxu0 0.0
        %930 = vmatpush1.msra.mxu0 0.0
        %931 = vmatprep.subr.mxu0 0.0
        %932 = vmatpush1.msra.mxu0 0.0
        %933 = vmatprep.subr.mxu0 0.0
        %934 = vmatpush1.msra.mxu0 0.0
        %935 = vmatprep.subr.mxu0 0.0
        %936 = vmatpush1.msra.mxu0 0.0
        %937 = vmatprep.subr.mxu0 0.0
        %938 = vmatpush1.msra.mxu0 0.0
        %939 = vmatprep.subr.mxu0 0.0
        %940 = vmatpush1.msra.mxu0 0.0
        %941 = vmatprep.subr.mxu0 0.0
        %942 = vmatpush1.msra.mxu0 0.0
        %943 = vmatprep.subr.mxu0 0.0
        %944 = vmatpush1.msra.mxu0 0.0
        %945 = vmatprep.subr.mxu0 0.0
        %946 = vmatpush1.msra.mxu0 0.0
        %947 = vmatprep.subr.mxu0 0.0
        %948 = vmatpush1.msra.mxu0 0.0
        %949 = vmatprep.subr.mxu0 0.0
        %950 = vmatpush1.msra.mxu0 0.0
        %951 = vmatprep.subr.mxu0 0.0
        %952 = vmatpush1.msra.mxu0 0.0
        %953 = vmatprep.subr.mxu0 0.0
        %954 = vmatpush1.msra.mxu0 0.0
        %955 = vmatprep.subr.mxu0 0.0
        %956 = vmatpush1.msra.mxu0 0.0
        %957 = vmatprep.subr.mxu0 0.0
        %958 = vmatpush1.msra.mxu0 0.0
        %959 = vmatprep.subr.mxu0 0.0
        %960 = vmatpush1.msra.mxu0 0.0
        %961 = vmatprep.subr.mxu0 0.0
        %962 = vmatpush1.msra.mxu0 0.0
        %963 = vmatprep.subr.mxu0 0.0
        %964 = vmatpush1.msra.mxu0 0.0
        %965 = vmatprep.subr.mxu0 0.0
        %966 = vmatpush1.msra.mxu0 0.0
        %967 = vmatprep.subr.mxu0 0.0
        %968 = vmatpush1.msra.mxu0 0.0
        %969 = vmatprep.subr.mxu0 0.0
        %970 = vmatpush1.msra.mxu0 0.0
        %971 = vmatprep.subr.mxu0 0.0
        %972 = vmatpush1.msra.mxu0 0.0
        %973 = vmatprep.subr.mxu0 0.0
        %974 = vmatpush1.msra.mxu0 0.0
        %975 = vmatprep.mubr.f32.mxu0 0.0
        %976 = vmatmul.mubr.f32.gmra.mrb[0].mxu0 %v906
        %v977 = vpop.f32.mrb[0].mxu0
        %v978 = vadd.f32 0.0, %v977
        %v979 = vpop.f32.mrb[0].mxu0
        %980 = vmatprep.mubr.f32.mxu0 0.0
        %981 = vmatmul.mubr.f32.gmra.mrb[0].mxu0 %v909
        %v982 = vpop.f32.mrb[0].mxu0
        %v983 = vadd.f32 0.0, %v982
        %v984 = vpop.f32.mrb[0].mxu0
        %985 = vdwg.mxu0
        %s986 = scalar_lea.vmem [#allocation10], 48
        %v987 = vld [vmem:[%s986] sm:$0xff]
        %v988 = vld [vmem:[%s986 + $0x8] sm:$0xff]
        %989 = vrot.lane.b32.xlu0 %v378, 104
        %v990 = vpop.permute.xlu0 %989
        %991 = vrot.lane.b32.xlu0 %v379, 104
        %v992 = vpop.permute.xlu0 %991
        %993 = vrot.lane.b32.xlu0 %v370, 40
        %v994 = vpop.permute.xlu0 %993
        %995 = vrot.lane.b32.xlu0 %v374, 40
        %v996 = vpop.permute.xlu0 %995
        %v997 = vsel %vm388, %v990, 0
        %v999 = vsel %vm388, %v992, 0
        %v1001 = vsel %vm388, %v994, 0
        %v1003 = vsel %vm388, %v996, 0
        %1005 = vmatprep.subr.mxu0 0.0
        %1006 = vmatpush1.xpose.msra.mxu0 %v1001
        %1007 = vmatprep.subr.mxu0 0.0
        %1008 = vmatpush1.xpose.msra.mxu0 %v1003
        %1009 = vmatprep.subr.mxu0 0.0
        %1010 = vmatpush1.xpose.msra.mxu0 0.0
        %1011 = vmatprep.subr.mxu0 0.0
        %1012 = vmatpush1.xpose.msra.mxu0 0.0
        %1013 = vmatprep.subr.mxu0 0.0
        %1014 = vmatpush1.xpose.msra.mxu0 0.0
        %1015 = vmatprep.subr.mxu0 0.0
        %1016 = vmatpush1.xpose.msra.mxu0 0.0
        %1017 = vmatprep.subr.mxu0 0.0
        %1018 = vmatpush1.xpose.msra.mxu0 0.0
        %1019 = vmatprep.subr.mxu0 0.0
        %1020 = vmatpush1.xpose.msra.mxu0 0.0
        %1021 = vmatprep.subr.mxu0 0.0
        %1022 = vmatpush1.xpose.msra.mxu0 0.0
        %1023 = vmatprep.subr.mxu0 0.0
        %1024 = vmatpush1.xpose.msra.mxu0 0.0
        %1025 = vmatprep.subr.mxu0 0.0
        %1026 = vmatpush1.xpose.msra.mxu0 0.0
        %1027 = vmatprep.subr.mxu0 0.0
        %1028 = vmatpush1.xpose.msra.mxu0 0.0
        %1029 = vmatprep.subr.mxu0 0.0
        %1030 = vmatpush1.xpose.msra.mxu0 0.0
        %1031 = vmatprep.subr.mxu0 0.0
        %1032 = vmatpush1.xpose.msra.mxu0 0.0
        %1033 = vmatprep.subr.mxu0 0.0
        %1034 = vmatpush1.xpose.msra.mxu0 0.0
        %1035 = vmatprep.subr.mxu0 0.0
        %1036 = vmatpush1.xpose.msra.mxu0 0.0
        %1037 = vmatprep.subr.mxu0 0.0
        %1038 = vmatpush1.xpose.msra.mxu0 0.0
        %1039 = vmatprep.subr.mxu0 0.0
        %1040 = vmatpush1.xpose.msra.mxu0 0.0
        %1041 = vmatprep.subr.mxu0 0.0
        %1042 = vmatpush1.xpose.msra.mxu0 0.0
        %1043 = vmatprep.subr.mxu0 0.0
        %1044 = vmatpush1.xpose.msra.mxu0 0.0
        %1045 = vmatprep.subr.mxu0 0.0
        %1046 = vmatpush1.xpose.msra.mxu0 0.0
        %1047 = vmatprep.subr.mxu0 0.0
        %1048 = vmatpush1.xpose.msra.mxu0 0.0
        %1049 = vmatprep.subr.mxu0 0.0
        %1050 = vmatpush1.xpose.msra.mxu0 0.0
        %1051 = vmatprep.subr.mxu0 0.0
        %1052 = vmatpush1.xpose.msra.mxu0 0.0
        %1053 = vmatprep.subr.mxu0 0.0
        %1054 = vmatpush1.xpose.msra.mxu0 0.0
        %1055 = vmatprep.subr.mxu0 0.0
        %1056 = vmatpush1.xpose.msra.mxu0 0.0
        %1057 = vmatprep.subr.mxu0 0.0
        %1058 = vmatpush1.xpose.msra.mxu0 0.0
        %1059 = vmatprep.subr.mxu0 0.0
        %1060 = vmatpush1.xpose.msra.mxu0 0.0
        %1061 = vmatprep.subr.mxu0 0.0
        %1062 = vmatpush1.xpose.msra.mxu0 0.0
        %1063 = vmatprep.subr.mxu0 0.0
        %1064 = vmatpush1.xpose.msra.mxu0 0.0
        %1065 = vmatprep.subr.mxu0 0.0
        %1066 = vmatpush1.xpose.msra.mxu0 0.0
        %1067 = vmatprep.subr.mxu0 0.0
        %1068 = vmatpush1.xpose.msra.mxu0 0.0
        %1069 = vmatprep.mubr.f32.mxu0 0.0
        %1070 = vmatmul.mubr.f32.gmra.mrb[0].mxu0 %v997
        %v1071 = vpop.f32.mrb[0].mxu0
        %v1072 = vadd.f32 %v987, %v1071
        %v1073 = vpop.f32.mrb[0].mxu0
        %1074 = vmatprep.mubr.f32.mxu0 0.0
        %1075 = vmatmul.mubr.f32.gmra.mrb[0].mxu0 %v999
        %v1076 = vpop.f32.mrb[0].mxu0
        %v1077 = vadd.f32 %v988, %v1076
        %v1078 = vpop.f32.mrb[0].mxu0
        %1079 = vdwg.mxu0
        %v1080 = vsel %vm474, %v1072, -inf
        %1081 = vmax.xlane.f32.xlu0 %v1080
        %v1082 = vpop.xlane.xlu0 %1081
        %v1083 = vsel %vm474, %v1077, -inf
        %1084 = vmax.xlane.f32.xlu0 %v1083
        %v1085 = vpop.xlane.xlu0 %1084
        %v1086 = vsub.f32 %v1072, %v1082
        %v1087 = vsub.f32 %v1077, %v1085
        %v1088 = vmul.f32 %v1086, 1.442695
        %v1089 = vpow.pop %v1088
        %v1090 = vmul.f32 %v1087, 1.442695
        %v1091 = vpow.pop %v1090
        %v1092 = vsel %vm474, %v1089, 0.0
        %1093 = vadd.xlane.f32.xlu0 %v1092
        %v1094 = vpop.xlane.xlu0 %1093
        %v1095 = vsel %vm474, %v1091, 0.0
        %1096 = vadd.xlane.f32.xlu0 %v1095
        %v1097 = vpop.xlane.xlu0 %1096
        %v1098 = vrcp.pop %v1094
        %v1099 = vrcp.pop %v1097
        %v1100 = vmul.f32 %v1089, %v1098
        %v1101 = vmul.f32 %v1091, %v1099
        %1102 = vrot.lane.b32.xlu0 %v372, 104
        %v1103 = vpop.permute.xlu0 %1102
        %1104 = vrot.lane.b32.xlu0 %v376, 104
        %v1105 = vpop.permute.xlu0 %1104
        %v1109 = vsel %vm474, %v1100, 0
        %v1112 = vsel %vm474, %v1101, 0
        %1114 = vmatprep.subr.mxu0 0.0
        %1115 = vmatpush1.msra.mxu0 %v1103
        %1116 = vmatprep.subr.mxu0 0.0
        %1117 = vmatpush1.msra.mxu0 %v1105
        %1118 = vmatprep.subr.mxu0 0.0
        %1119 = vmatpush1.msra.mxu0 0.0
        %1120 = vmatprep.subr.mxu0 0.0
        %1121 = vmatpush1.msra.mxu0 0.0
        %1122 = vmatprep.subr.mxu0 0.0
        %1123 = vmatpush1.msra.mxu0 0.0
        %1124 = vmatprep.subr.mxu0 0.0
        %1125 = vmatpush1.msra.mxu0 0.0
        %1126 = vmatprep.subr.mxu0 0.0
        %1127 = vmatpush1.msra.mxu0 0.0
        %1128 = vmatprep.subr.mxu0 0.0
        %1129 = vmatpush1.msra.mxu0 0.0
        %1130 = vmatprep.subr.mxu0 0.0
        %1131 = vmatpush1.msra.mxu0 0.0
        %1132 = vmatprep.subr.mxu0 0.0
        %1133 = vmatpush1.msra.mxu0 0.0
        %1134 = vmatprep.subr.mxu0 0.0
        %1135 = vmatpush1.msra.mxu0 0.0
        %1136 = vmatprep.subr.mxu0 0.0
        %1137 = vmatpush1.msra.mxu0 0.0
        %1138 = vmatprep.subr.mxu0 0.0
        %1139 = vmatpush1.msra.mxu0 0.0
        %1140 = vmatprep.subr.mxu0 0.0
        %1141 = vmatpush1.msra.mxu0 0.0
        %1142 = vmatprep.subr.mxu0 0.0
        %1143 = vmatpush1.msra.mxu0 0.0
        %1144 = vmatprep.subr.mxu0 0.0
        %1145 = vmatpush1.msra.mxu0 0.0
        %1146 = vmatprep.subr.mxu0 0.0
        %1147 = vmatpush1.msra.mxu0 0.0
        %1148 = vmatprep.subr.mxu0 0.0
        %1149 = vmatpush1.msra.mxu0 0.0
        %1150 = vmatprep.subr.mxu0 0.0
        %1151 = vmatpush1.msra.mxu0 0.0
        %1152 = vmatprep.subr.mxu0 0.0
        %1153 = vmatpush1.msra.mxu0 0.0
        %1154 = vmatprep.subr.mxu0 0.0
        %1155 = vmatpush1.msra.mxu0 0.0
        %1156 = vmatprep.subr.mxu0 0.0
        %1157 = vmatpush1.msra.mxu0 0.0
        %1158 = vmatprep.subr.mxu0 0.0
        %1159 = vmatpush1.msra.mxu0 0.0
        %1160 = vmatprep.subr.mxu0 0.0
        %1161 = vmatpush1.msra.mxu0 0.0
        %1162 = vmatprep.subr.mxu0 0.0
        %1163 = vmatpush1.msra.mxu0 0.0
        %1164 = vmatprep.subr.mxu0 0.0
        %1165 = vmatpush1.msra.mxu0 0.0
        %1166 = vmatprep.subr.mxu0 0.0
        %1167 = vmatpush1.msra.mxu0 0.0
        %1168 = vmatprep.subr.mxu0 0.0
        %1169 = vmatpush1.msra.mxu0 0.0
        %1170 = vmatprep.subr.mxu0 0.0
        %1171 = vmatpush1.msra.mxu0 0.0
        %1172 = vmatprep.subr.mxu0 0.0
        %1173 = vmatpush1.msra.mxu0 0.0
        %1174 = vmatprep.subr.mxu0 0.0
        %1175 = vmatpush1.msra.mxu0 0.0
        %1176 = vmatprep.subr.mxu0 0.0
        %1177 = vmatpush1.msra.mxu0 0.0
        %1178 = vmatprep.mubr.f32.mxu0 0.0
        %1179 = vmatmul.mubr.f32.gmra.mrb[0].mxu0 %v1109
        %v1180 = vpop.f32.mrb[0].mxu0
        %v1181 = vadd.f32 0.0, %v1180
        %v1182 = vpop.f32.mrb[0].mxu0
        %1183 = vmatprep.mubr.f32.mxu0 0.0
        %1184 = vmatmul.mubr.f32.gmra.mrb[0].mxu0 %v1112
        %v1185 = vpop.f32.mrb[0].mxu0
        %v1186 = vadd.f32 0.0, %v1185
        %v1187 = vpop.f32.mrb[0].mxu0
        %1188 = vdwg.mxu0
        %s1189 = scalar_lea.vmem [#allocation10], 64
        %v1190 = vld [vmem:[%s1189] sm:$0xff]
        %v1191 = vld [vmem:[%s1189 + $0x8] sm:$0xff]
        %1192 = vrot.lane.b32.xlu0 %v378, 96
        %v1193 = vpop.permute.xlu0 %1192
        %1194 = vrot.lane.b32.xlu0 %v379, 96
        %v1195 = vpop.permute.xlu0 %1194
        %1196 = vrot.lane.b32.xlu0 %v370, 32
        %v1197 = vpop.permute.xlu0 %1196
        %1198 = vrot.lane.b32.xlu0 %v374, 32
        %v1199 = vpop.permute.xlu0 %1198
        %v1200 = vsel %vm388, %v1193, 0
        %v1202 = vsel %vm388, %v1195, 0
        %v1204 = vsel %vm388, %v1197, 0
        %v1206 = vsel %vm388, %v1199, 0
        %1208 = vmatprep.subr.mxu0 0.0
        %1209 = vmatpush1.xpose.msra.mxu0 %v1204
        %1210 = vmatprep.subr.mxu0 0.0
        %1211 = vmatpush1.xpose.msra.mxu0 %v1206
        %1212 = vmatprep.subr.mxu0 0.0
        %1213 = vmatpush1.xpose.msra.mxu0 0.0
        %1214 = vmatprep.subr.mxu0 0.0
        %1215 = vmatpush1.xpose.msra.mxu0 0.0
        %1216 = vmatprep.subr.mxu0 0.0
        %1217 = vmatpush1.xpose.msra.mxu0 0.0
        %1218 = vmatprep.subr.mxu0 0.0
        %1219 = vmatpush1.xpose.msra.mxu0 0.0
        %1220 = vmatprep.subr.mxu0 0.0
        %1221 = vmatpush1.xpose.msra.mxu0 0.0
        %1222 = vmatprep.subr.mxu0 0.0
        %1223 = vmatpush1.xpose.msra.mxu0 0.0
        %1224 = vmatprep.subr.mxu0 0.0
        %1225 = vmatpush1.xpose.msra.mxu0 0.0
        %1226 = vmatprep.subr.mxu0 0.0
        %1227 = vmatpush1.xpose.msra.mxu0 0.0
        %1228 = vmatprep.subr.mxu0 0.0
        %1229 = vmatpush1.xpose.msra.mxu0 0.0
        %1230 = vmatprep.subr.mxu0 0.0
        %1231 = vmatpush1.xpose.msra.mxu0 0.0
        %1232 = vmatprep.subr.mxu0 0.0
        %1233 = vmatpush1.xpose.msra.mxu0 0.0
        %1234 = vmatprep.subr.mxu0 0.0
        %1235 = vmatpush1.xpose.msra.mxu0 0.0
        %1236 = vmatprep.subr.mxu0 0.0
        %1237 = vmatpush1.xpose.msra.mxu0 0.0
        %1238 = vmatprep.subr.mxu0 0.0
        %1239 = vmatpush1.xpose.msra.mxu0 0.0
        %1240 = vmatprep.subr.mxu0 0.0
        %1241 = vmatpush1.xpose.msra.mxu0 0.0
        %1242 = vmatprep.subr.mxu0 0.0
        %1243 = vmatpush1.xpose.msra.mxu0 0.0
        %1244 = vmatprep.subr.mxu0 0.0
        %1245 = vmatpush1.xpose.msra.mxu0 0.0
        %1246 = vmatprep.subr.mxu0 0.0
        %1247 = vmatpush1.xpose.msra.mxu0 0.0
        %1248 = vmatprep.subr.mxu0 0.0
        %1249 = vmatpush1.xpose.msra.mxu0 0.0
        %1250 = vmatprep.subr.mxu0 0.0
        %1251 = vmatpush1.xpose.msra.mxu0 0.0
        %1252 = vmatprep.subr.mxu0 0.0
        %1253 = vmatpush1.xpose.msra.mxu0 0.0
        %1254 = vmatprep.subr.mxu0 0.0
        %1255 = vmatpush1.xpose.msra.mxu0 0.0
        %1256 = vmatprep.subr.mxu0 0.0
        %1257 = vmatpush1.xpose.msra.mxu0 0.0
        %1258 = vmatprep.subr.mxu0 0.0
        %1259 = vmatpush1.xpose.msra.mxu0 0.0
        %1260 = vmatprep.subr.mxu0 0.0
        %1261 = vmatpush1.xpose.msra.mxu0 0.0
        %1262 = vmatprep.subr.mxu0 0.0
        %1263 = vmatpush1.xpose.msra.mxu0 0.0
        %1264 = vmatprep.subr.mxu0 0.0
        %1265 = vmatpush1.xpose.msra.mxu0 0.0
        %1266 = vmatprep.subr.mxu0 0.0
        %1267 = vmatpush1.xpose.msra.mxu0 0.0
        %1268 = vmatprep.subr.mxu0 0.0
        %1269 = vmatpush1.xpose.msra.mxu0 0.0
        %1270 = vmatprep.subr.mxu0 0.0
        %1271 = vmatpush1.xpose.msra.mxu0 0.0
        %1272 = vmatprep.mubr.f32.mxu0 0.0
        %1273 = vmatmul.mubr.f32.gmra.mrb[0].mxu0 %v1200
        %v1274 = vpop.f32.mrb[0].mxu0
        %v1275 = vadd.f32 %v1190, %v1274
        %v1276 = vpop.f32.mrb[0].mxu0
        %1277 = vmatprep.mubr.f32.mxu0 0.0
        %1278 = vmatmul.mubr.f32.gmra.mrb[0].mxu0 %v1202
        %v1279 = vpop.f32.mrb[0].mxu0
        %v1280 = vadd.f32 %v1191, %v1279
        %v1281 = vpop.f32.mrb[0].mxu0
        %1282 = vdwg.mxu0
        %v1283 = vsel %vm474, %v1275, -inf
        %1284 = vmax.xlane.f32.xlu0 %v1283
        %v1285 = vpop.xlane.xlu0 %1284
        %v1286 = vsel %vm474, %v1280, -inf
        %1287 = vmax.xlane.f32.xlu0 %v1286
        %v1288 = vpop.xlane.xlu0 %1287
        %v1289 = vsub.f32 %v1275, %v1285
        %v1290 = vsub.f32 %v1280, %v1288
        %v1291 = vmul.f32 %v1289, 1.442695
        %v1292 = vpow.pop %v1291
        %v1293 = vmul.f32 %v1290, 1.442695
        %v1294 = vpow.pop %v1293
        %v1295 = vsel %vm474, %v1292, 0.0
        %1296 = vadd.xlane.f32.xlu0 %v1295
        %v1297 = vpop.xlane.xlu0 %1296
        %v1298 = vsel %vm474, %v1294, 0.0
        %1299 = vadd.xlane.f32.xlu0 %v1298
        %v1300 = vpop.xlane.xlu0 %1299
        %v1301 = vrcp.pop %v1297
        %v1302 = vrcp.pop %v1300
        %v1303 = vmul.f32 %v1292, %v1301
        %v1304 = vmul.f32 %v1294, %v1302
        %1305 = vrot.lane.b32.xlu0 %v372, 96
        %v1306 = vpop.permute.xlu0 %1305
        %1307 = vrot.lane.b32.xlu0 %v376, 96
        %v1308 = vpop.permute.xlu0 %1307
        %v1312 = vsel %vm474, %v1303, 0
        %v1315 = vsel %vm474, %v1304, 0
        %1317 = vmatprep.subr.mxu0 0.0
        %1318 = vmatpush1.msra.mxu0 %v1306
        %1319 = vmatprep.subr.mxu0 0.0
        %1320 = vmatpush1.msra.mxu0 %v1308
        %1321 = vmatprep.subr.mxu0 0.0
        %1322 = vmatpush1.msra.mxu0 0.0
        %1323 = vmatprep.subr.mxu0 0.0
        %1324 = vmatpush1.msra.mxu0 0.0
        %1325 = vmatprep.subr.mxu0 0.0
        %1326 = vmatpush1.msra.mxu0 0.0
        %1327 = vmatprep.subr.mxu0 0.0
        %1328 = vmatpush1.msra.mxu0 0.0
        %1329 = vmatprep.subr.mxu0 0.0
        %1330 = vmatpush1.msra.mxu0 0.0
        %1331 = vmatprep.subr.mxu0 0.0
        %1332 = vmatpush1.msra.mxu0 0.0
        %1333 = vmatprep.subr.mxu0 0.0
        %1334 = vmatpush1.msra.mxu0 0.0
        %1335 = vmatprep.subr.mxu0 0.0
        %1336 = vmatpush1.msra.mxu0 0.0
        %1337 = vmatprep.subr.mxu0 0.0
        %1338 = vmatpush1.msra.mxu0 0.0
        %1339 = vmatprep.subr.mxu0 0.0
        %1340 = vmatpush1.msra.mxu0 0.0
        %1341 = vmatprep.subr.mxu0 0.0
        %1342 = vmatpush1.msra.mxu0 0.0
        %1343 = vmatprep.subr.mxu0 0.0
        %1344 = vmatpush1.msra.mxu0 0.0
        %1345 = vmatprep.subr.mxu0 0.0
        %1346 = vmatpush1.msra.mxu0 0.0
        %1347 = vmatprep.subr.mxu0 0.0
        %1348 = vmatpush1.msra.mxu0 0.0
        %1349 = vmatprep.subr.mxu0 0.0
        %1350 = vmatpush1.msra.mxu0 0.0
        %1351 = vmatprep.subr.mxu0 0.0
        %1352 = vmatpush1.msra.mxu0 0.0
        %1353 = vmatprep.subr.mxu0 0.0
        %1354 = vmatpush1.msra.mxu0 0.0
        %1355 = vmatprep.subr.mxu0 0.0
        %1356 = vmatpush1.msra.mxu0 0.0
        %1357 = vmatprep.subr.mxu0 0.0
        %1358 = vmatpush1.msra.mxu0 0.0
        %1359 = vmatprep.subr.mxu0 0.0
        %1360 = vmatpush1.msra.mxu0 0.0
        %1361 = vmatprep.subr.mxu0 0.0
        %1362 = vmatpush1.msra.mxu0 0.0
        %1363 = vmatprep.subr.mxu0 0.0
        %1364 = vmatpush1.msra.mxu0 0.0
        %1365 = vmatprep.subr.mxu0 0.0
        %1366 = vmatpush1.msra.mxu0 0.0
        %1367 = vmatprep.subr.mxu0 0.0
        %1368 = vmatpush1.msra.mxu0 0.0
        %1369 = vmatprep.subr.mxu0 0.0
        %1370 = vmatpush1.msra.mxu0 0.0
        %1371 = vmatprep.subr.mxu0 0.0
        %1372 = vmatpush1.msra.mxu0 0.0
        %1373 = vmatprep.subr.mxu0 0.0
        %1374 = vmatpush1.msra.mxu0 0.0
        %1375 = vmatprep.subr.mxu0 0.0
        %1376 = vmatpush1.msra.mxu0 0.0
        %1377 = vmatprep.subr.mxu0 0.0
        %1378 = vmatpush1.msra.mxu0 0.0
        %1379 = vmatprep.subr.mxu0 0.0
        %1380 = vmatpush1.msra.mxu0 0.0
        %1381 = vmatprep.mubr.f32.mxu0 0.0
        %1382 = vmatmul.mubr.f32.gmra.mrb[0].mxu0 %v1312
        %v1383 = vpop.f32.mrb[0].mxu0
        %v1384 = vadd.f32 0.0, %v1383
        %v1385 = vpop.f32.mrb[0].mxu0
        %1386 = vmatprep.mubr.f32.mxu0 0.0
        %1387 = vmatmul.mubr.f32.gmra.mrb[0].mxu0 %v1315
        %v1388 = vpop.f32.mrb[0].mxu0
        %v1389 = vadd.f32 0.0, %v1388
        %v1390 = vpop.f32.mrb[0].mxu0
        %1391 = vdwg.mxu0
        %s1392 = scalar_lea.vmem [#allocation10], 80
        %v1393 = vld [vmem:[%s1392] sm:$0xff]
        %v1394 = vld [vmem:[%s1392 + $0x8] sm:$0xff]
        %1395 = vrot.lane.b32.xlu0 %v378, 88
        %v1396 = vpop.permute.xlu0 %1395
        %1397 = vrot.lane.b32.xlu0 %v379, 88
        %v1398 = vpop.permute.xlu0 %1397
        %1399 = vrot.lane.b32.xlu0 %v370, 24
        %v1400 = vpop.permute.xlu0 %1399
        %1401 = vrot.lane.b32.xlu0 %v374, 24
        %v1402 = vpop.permute.xlu0 %1401
        %v1403 = vsel %vm388, %v1396, 0
        %v1405 = vsel %vm388, %v1398, 0
        %v1407 = vsel %vm388, %v1400, 0
        %v1409 = vsel %vm388, %v1402, 0
        %1411 = vmatprep.subr.mxu0 0.0
        %1412 = vmatpush1.xpose.msra.mxu0 %v1407
        %1413 = vmatprep.subr.mxu0 0.0
        %1414 = vmatpush1.xpose.msra.mxu0 %v1409
        %1415 = vmatprep.subr.mxu0 0.0
        %1416 = vmatpush1.xpose.msra.mxu0 0.0
        %1417 = vmatprep.subr.mxu0 0.0
        %1418 = vmatpush1.xpose.msra.mxu0 0.0
        %1419 = vmatprep.subr.mxu0 0.0
        %1420 = vmatpush1.xpose.msra.mxu0 0.0
        %1421 = vmatprep.subr.mxu0 0.0
        %1422 = vmatpush1.xpose.msra.mxu0 0.0
        %1423 = vmatprep.subr.mxu0 0.0
        %1424 = vmatpush1.xpose.msra.mxu0 0.0
        %1425 = vmatprep.subr.mxu0 0.0
        %1426 = vmatpush1.xpose.msra.mxu0 0.0
        %1427 = vmatprep.subr.mxu0 0.0
        %1428 = vmatpush1.xpose.msra.mxu0 0.0
        %1429 = vmatprep.subr.mxu0 0.0
        %1430 = vmatpush1.xpose.msra.mxu0 0.0
        %1431 = vmatprep.subr.mxu0 0.0
        %1432 = vmatpush1.xpose.msra.mxu0 0.0
        %1433 = vmatprep.subr.mxu0 0.0
        %1434 = vmatpush1.xpose.msra.mxu0 0.0
        %1435 = vmatprep.subr.mxu0 0.0
        %1436 = vmatpush1.xpose.msra.mxu0 0.0
        %1437 = vmatprep.subr.mxu0 0.0
        %1438 = vmatpush1.xpose.msra.mxu0 0.0
        %1439 = vmatprep.subr.mxu0 0.0
        %1440 = vmatpush1.xpose.msra.mxu0 0.0
        %1441 = vmatprep.subr.mxu0 0.0
        %1442 = vmatpush1.xpose.msra.mxu0 0.0
        %1443 = vmatprep.subr.mxu0 0.0
        %1444 = vmatpush1.xpose.msra.mxu0 0.0
        %1445 = vmatprep.subr.mxu0 0.0
        %1446 = vmatpush1.xpose.msra.mxu0 0.0
        %1447 = vmatprep.subr.mxu0 0.0
        %1448 = vmatpush1.xpose.msra.mxu0 0.0
        %1449 = vmatprep.subr.mxu0 0.0
        %1450 = vmatpush1.xpose.msra.mxu0 0.0
        %1451 = vmatprep.subr.mxu0 0.0
        %1452 = vmatpush1.xpose.msra.mxu0 0.0
        %1453 = vmatprep.subr.mxu0 0.0
        %1454 = vmatpush1.xpose.msra.mxu0 0.0
        %1455 = vmatprep.subr.mxu0 0.0
        %1456 = vmatpush1.xpose.msra.mxu0 0.0
        %1457 = vmatprep.subr.mxu0 0.0
        %1458 = vmatpush1.xpose.msra.mxu0 0.0
        %1459 = vmatprep.subr.mxu0 0.0
        %1460 = vmatpush1.xpose.msra.mxu0 0.0
        %1461 = vmatprep.subr.mxu0 0.0
        %1462 = vmatpush1.xpose.msra.mxu0 0.0
        %1463 = vmatprep.subr.mxu0 0.0
        %1464 = vmatpush1.xpose.msra.mxu0 0.0
        %1465 = vmatprep.subr.mxu0 0.0
        %1466 = vmatpush1.xpose.msra.mxu0 0.0
        %1467 = vmatprep.subr.mxu0 0.0
        %1468 = vmatpush1.xpose.msra.mxu0 0.0
        %1469 = vmatprep.subr.mxu0 0.0
        %1470 = vmatpush1.xpose.msra.mxu0 0.0
        %1471 = vmatprep.subr.mxu0 0.0
        %1472 = vmatpush1.xpose.msra.mxu0 0.0
        %1473 = vmatprep.subr.mxu0 0.0
        %1474 = vmatpush1.xpose.msra.mxu0 0.0
        %1475 = vmatprep.mubr.f32.mxu0 0.0
        %1476 = vmatmul.mubr.f32.gmra.mrb[0].mxu0 %v1403
        %v1477 = vpop.f32.mrb[0].mxu0
        %v1478 = vadd.f32 %v1393, %v1477
        %v1479 = vpop.f32.mrb[0].mxu0
        %1480 = vmatprep.mubr.f32.mxu0 0.0
        %1481 = vmatmul.mubr.f32.gmra.mrb[0].mxu0 %v1405
        %v1482 = vpop.f32.mrb[0].mxu0
        %v1483 = vadd.f32 %v1394, %v1482
        %v1484 = vpop.f32.mrb[0].mxu0
        %1485 = vdwg.mxu0
        %v1486 = vsel %vm474, %v1478, -inf
        %1487 = vmax.xlane.f32.xlu0 %v1486
        %v1488 = vpop.xlane.xlu0 %1487
        %v1489 = vsel %vm474, %v1483, -inf
        %1490 = vmax.xlane.f32.xlu0 %v1489
        %v1491 = vpop.xlane.xlu0 %1490
        %v1492 = vsub.f32 %v1478, %v1488
        %v1493 = vsub.f32 %v1483, %v1491
        %v1494 = vmul.f32 %v1492, 1.442695
        %v1495 = vpow.pop %v1494
        %v1496 = vmul.f32 %v1493, 1.442695
        %v1497 = vpow.pop %v1496
        %v1498 = vsel %vm474, %v1495, 0.0
        %1499 = vadd.xlane.f32.xlu0 %v1498
        %v1500 = vpop.xlane.xlu0 %1499
        %v1501 = vsel %vm474, %v1497, 0.0
        %1502 = vadd.xlane.f32.xlu0 %v1501
        %v1503 = vpop.xlane.xlu0 %1502
        %v1504 = vrcp.pop %v1500
        %v1505 = vrcp.pop %v1503
        %v1506 = vmul.f32 %v1495, %v1504
        %v1507 = vmul.f32 %v1497, %v1505
        %1508 = vrot.lane.b32.xlu0 %v372, 88
        %v1509 = vpop.permute.xlu0 %1508
        %1510 = vrot.lane.b32.xlu0 %v376, 88
        %v1511 = vpop.permute.xlu0 %1510
        %v1515 = vsel %vm474, %v1506, 0
        %v1518 = vsel %vm474, %v1507, 0
        %1520 = vmatprep.subr.mxu0 0.0
        %1521 = vmatpush1.msra.mxu0 %v1509
        %1522 = vmatprep.subr.mxu0 0.0
        %1523 = vmatpush1.msra.mxu0 %v1511
        %1524 = vmatprep.subr.mxu0 0.0
        %1525 = vmatpush1.msra.mxu0 0.0
        %1526 = vmatprep.subr.mxu0 0.0
        %1527 = vmatpush1.msra.mxu0 0.0
        %1528 = vmatprep.subr.mxu0 0.0
        %1529 = vmatpush1.msra.mxu0 0.0
        %1530 = vmatprep.subr.mxu0 0.0
        %1531 = vmatpush1.msra.mxu0 0.0
        %1532 = vmatprep.subr.mxu0 0.0
        %1533 = vmatpush1.msra.mxu0 0.0
        %1534 = vmatprep.subr.mxu0 0.0
        %1535 = vmatpush1.msra.mxu0 0.0
        %1536 = vmatprep.subr.mxu0 0.0
        %1537 = vmatpush1.msra.mxu0 0.0
        %1538 = vmatprep.subr.mxu0 0.0
        %1539 = vmatpush1.msra.mxu0 0.0
        %1540 = vmatprep.subr.mxu0 0.0
        %1541 = vmatpush1.msra.mxu0 0.0
        %1542 = vmatprep.subr.mxu0 0.0
        %1543 = vmatpush1.msra.mxu0 0.0
        %1544 = vmatprep.subr.mxu0 0.0
        %1545 = vmatpush1.msra.mxu0 0.0
        %1546 = vmatprep.subr.mxu0 0.0
        %1547 = vmatpush1.msra.mxu0 0.0
        %1548 = vmatprep.subr.mxu0 0.0
        %1549 = vmatpush1.msra.mxu0 0.0
        %1550 = vmatprep.subr.mxu0 0.0
        %1551 = vmatpush1.msra.mxu0 0.0
        %1552 = vmatprep.subr.mxu0 0.0
        %1553 = vmatpush1.msra.mxu0 0.0
        %1554 = vmatprep.subr.mxu0 0.0
        %1555 = vmatpush1.msra.mxu0 0.0
        %1556 = vmatprep.subr.mxu0 0.0
        %1557 = vmatpush1.msra.mxu0 0.0
        %1558 = vmatprep.subr.mxu0 0.0
        %1559 = vmatpush1.msra.mxu0 0.0
        %1560 = vmatprep.subr.mxu0 0.0
        %1561 = vmatpush1.msra.mxu0 0.0
        %1562 = vmatprep.subr.mxu0 0.0
        %1563 = vmatpush1.msra.mxu0 0.0
        %1564 = vmatprep.subr.mxu0 0.0
        %1565 = vmatpush1.msra.mxu0 0.0
        %1566 = vmatprep.subr.mxu0 0.0
        %1567 = vmatpush1.msra.mxu0 0.0
        %1568 = vmatprep.subr.mxu0 0.0
        %1569 = vmatpush1.msra.mxu0 0.0
        %1570 = vmatprep.subr.mxu0 0.0
        %1571 = vmatpush1.msra.mxu0 0.0
        %1572 = vmatprep.subr.mxu0 0.0
        %1573 = vmatpush1.msra.mxu0 0.0
        %1574 = vmatprep.subr.mxu0 0.0
        %1575 = vmatpush1.msra.mxu0 0.0
        %1576 = vmatprep.subr.mxu0 0.0
        %1577 = vmatpush1.msra.mxu0 0.0
        %1578 = vmatprep.subr.mxu0 0.0
        %1579 = vmatpush1.msra.mxu0 0.0
        %1580 = vmatprep.subr.mxu0 0.0
        %1581 = vmatpush1.msra.mxu0 0.0
        %1582 = vmatprep.subr.mxu0 0.0
        %1583 = vmatpush1.msra.mxu0 0.0
        %1584 = vmatprep.mubr.f32.mxu0 0.0
        %1585 = vmatmul.mubr.f32.gmra.mrb[0].mxu0 %v1515
        %v1586 = vpop.f32.mrb[0].mxu0
        %v1587 = vadd.f32 0.0, %v1586
        %v1588 = vpop.f32.mrb[0].mxu0
        %1589 = vmatprep.mubr.f32.mxu0 0.0
        %1590 = vmatmul.mubr.f32.gmra.mrb[0].mxu0 %v1518
        %v1591 = vpop.f32.mrb[0].mxu0
        %v1592 = vadd.f32 0.0, %v1591
        %v1593 = vpop.f32.mrb[0].mxu0
        %1594 = vdwg.mxu0
        %s1595 = scalar_lea.vmem [#allocation10], 96
        %v1596 = vld [vmem:[%s1595] sm:$0xff]
        %v1597 = vld [vmem:[%s1595 + $0x8] sm:$0xff]
        %1598 = vrot.lane.b32.xlu0 %v378, 80
        %v1599 = vpop.permute.xlu0 %1598
        %1600 = vrot.lane.b32.xlu0 %v379, 80
        %v1601 = vpop.permute.xlu0 %1600
        %1602 = vrot.lane.b32.xlu0 %v370, 16
        %v1603 = vpop.permute.xlu0 %1602
        %1604 = vrot.lane.b32.xlu0 %v374, 16
        %v1605 = vpop.permute.xlu0 %1604
        %v1606 = vsel %vm388, %v1599, 0
        %v1608 = vsel %vm388, %v1601, 0
        %v1610 = vsel %vm388, %v1603, 0
        %v1612 = vsel %vm388, %v1605, 0
        %1614 = vmatprep.subr.mxu0 0.0
        %1615 = vmatpush1.xpose.msra.mxu0 %v1610
        %1616 = vmatprep.subr.mxu0 0.0
        %1617 = vmatpush1.xpose.msra.mxu0 %v1612
        %1618 = vmatprep.subr.mxu0 0.0
        %1619 = vmatpush1.xpose.msra.mxu0 0.0
        %1620 = vmatprep.subr.mxu0 0.0
        %1621 = vmatpush1.xpose.msra.mxu0 0.0
        %1622 = vmatprep.subr.mxu0 0.0
        %1623 = vmatpush1.xpose.msra.mxu0 0.0
        %1624 = vmatprep.subr.mxu0 0.0
        %1625 = vmatpush1.xpose.msra.mxu0 0.0
        %1626 = vmatprep.subr.mxu0 0.0
        %1627 = vmatpush1.xpose.msra.mxu0 0.0
        %1628 = vmatprep.subr.mxu0 0.0
        %1629 = vmatpush1.xpose.msra.mxu0 0.0
        %1630 = vmatprep.subr.mxu0 0.0
        %1631 = vmatpush1.xpose.msra.mxu0 0.0
        %1632 = vmatprep.subr.mxu0 0.0
        %1633 = vmatpush1.xpose.msra.mxu0 0.0
        %1634 = vmatprep.subr.mxu0 0.0
        %1635 = vmatpush1.xpose.msra.mxu0 0.0
        %1636 = vmatprep.subr.mxu0 0.0
        %1637 = vmatpush1.xpose.msra.mxu0 0.0
        %1638 = vmatprep.subr.mxu0 0.0
        %1639 = vmatpush1.xpose.msra.mxu0 0.0
        %1640 = vmatprep.subr.mxu0 0.0
        %1641 = vmatpush1.xpose.msra.mxu0 0.0
        %1642 = vmatprep.subr.mxu0 0.0
        %1643 = vmatpush1.xpose.msra.mxu0 0.0
        %1644 = vmatprep.subr.mxu0 0.0
        %1645 = vmatpush1.xpose.msra.mxu0 0.0
        %1646 = vmatprep.subr.mxu0 0.0
        %1647 = vmatpush1.xpose.msra.mxu0 0.0
        %1648 = vmatprep.subr.mxu0 0.0
        %1649 = vmatpush1.xpose.msra.mxu0 0.0
        %1650 = vmatprep.subr.mxu0 0.0
        %1651 = vmatpush1.xpose.msra.mxu0 0.0
        %1652 = vmatprep.subr.mxu0 0.0
        %1653 = vmatpush1.xpose.msra.mxu0 0.0
        %1654 = vmatprep.subr.mxu0 0.0
        %1655 = vmatpush1.xpose.msra.mxu0 0.0
        %1656 = vmatprep.subr.mxu0 0.0
        %1657 = vmatpush1.xpose.msra.mxu0 0.0
        %1658 = vmatprep.subr.mxu0 0.0
        %1659 = vmatpush1.xpose.msra.mxu0 0.0
        %1660 = vmatprep.subr.mxu0 0.0
        %1661 = vmatpush1.xpose.msra.mxu0 0.0
        %1662 = vmatprep.subr.mxu0 0.0
        %1663 = vmatpush1.xpose.msra.mxu0 0.0
        %1664 = vmatprep.subr.mxu0 0.0
        %1665 = vmatpush1.xpose.msra.mxu0 0.0
        %1666 = vmatprep.subr.mxu0 0.0
        %1667 = vmatpush1.xpose.msra.mxu0 0.0
        %1668 = vmatprep.subr.mxu0 0.0
        %1669 = vmatpush1.xpose.msra.mxu0 0.0
        %1670 = vmatprep.subr.mxu0 0.0
        %1671 = vmatpush1.xpose.msra.mxu0 0.0
        %1672 = vmatprep.subr.mxu0 0.0
        %1673 = vmatpush1.xpose.msra.mxu0 0.0
        %1674 = vmatprep.subr.mxu0 0.0
        %1675 = vmatpush1.xpose.msra.mxu0 0.0
        %1676 = vmatprep.subr.mxu0 0.0
        %1677 = vmatpush1.xpose.msra.mxu0 0.0
        %1678 = vmatprep.mubr.f32.mxu0 0.0
        %1679 = vmatmul.mubr.f32.gmra.mrb[0].mxu0 %v1606
        %v1680 = vpop.f32.mrb[0].mxu0
        %v1681 = vadd.f32 %v1596, %v1680
        %v1682 = vpop.f32.mrb[0].mxu0
        %1683 = vmatprep.mubr.f32.mxu0 0.0
        %1684 = vmatmul.mubr.f32.gmra.mrb[0].mxu0 %v1608
        %v1685 = vpop.f32.mrb[0].mxu0
        %v1686 = vadd.f32 %v1597, %v1685
        %v1687 = vpop.f32.mrb[0].mxu0
        %1688 = vdwg.mxu0
        %v1689 = vsel %vm474, %v1681, -inf
        %1690 = vmax.xlane.f32.xlu0 %v1689
        %v1691 = vpop.xlane.xlu0 %1690
        %v1692 = vsel %vm474, %v1686, -inf
        %1693 = vmax.xlane.f32.xlu0 %v1692
        %v1694 = vpop.xlane.xlu0 %1693
        %v1695 = vsub.f32 %v1681, %v1691
        %v1696 = vsub.f32 %v1686, %v1694
        %v1697 = vmul.f32 %v1695, 1.442695
        %v1698 = vpow.pop %v1697
        %v1699 = vmul.f32 %v1696, 1.442695
        %v1700 = vpow.pop %v1699
        %v1701 = vsel %vm474, %v1698, 0.0
        %1702 = vadd.xlane.f32.xlu0 %v1701
        %v1703 = vpop.xlane.xlu0 %1702
        %v1704 = vsel %vm474, %v1700, 0.0
        %1705 = vadd.xlane.f32.xlu0 %v1704
        %v1706 = vpop.xlane.xlu0 %1705
        %v1707 = vrcp.pop %v1703
        %v1708 = vrcp.pop %v1706
        %v1709 = vmul.f32 %v1698, %v1707
        %v1710 = vmul.f32 %v1700, %v1708
        %1711 = vrot.lane.b32.xlu0 %v372, 80
        %v1712 = vpop.permute.xlu0 %1711
        %1713 = vrot.lane.b32.xlu0 %v376, 80
        %v1714 = vpop.permute.xlu0 %1713
        %v1718 = vsel %vm474, %v1709, 0
        %v1721 = vsel %vm474, %v1710, 0
        %1723 = vmatprep.subr.mxu0 0.0
        %1724 = vmatpush1.msra.mxu0 %v1712
        %1725 = vmatprep.subr.mxu0 0.0
        %1726 = vmatpush1.msra.mxu0 %v1714
        %1727 = vmatprep.subr.mxu0 0.0
        %1728 = vmatpush1.msra.mxu0 0.0
        %1729 = vmatprep.subr.mxu0 0.0
        %1730 = vmatpush1.msra.mxu0 0.0
        %1731 = vmatprep.subr.mxu0 0.0
        %1732 = vmatpush1.msra.mxu0 0.0
        %1733 = vmatprep.subr.mxu0 0.0
        %1734 = vmatpush1.msra.mxu0 0.0
        %1735 = vmatprep.subr.mxu0 0.0
        %1736 = vmatpush1.msra.mxu0 0.0
        %1737 = vmatprep.subr.mxu0 0.0
        %1738 = vmatpush1.msra.mxu0 0.0
        %1739 = vmatprep.subr.mxu0 0.0
        %1740 = vmatpush1.msra.mxu0 0.0
        %1741 = vmatprep.subr.mxu0 0.0
        %1742 = vmatpush1.msra.mxu0 0.0
        %1743 = vmatprep.subr.mxu0 0.0
        %1744 = vmatpush1.msra.mxu0 0.0
        %1745 = vmatprep.subr.mxu0 0.0
        %1746 = vmatpush1.msra.mxu0 0.0
        %1747 = vmatprep.subr.mxu0 0.0
        %1748 = vmatpush1.msra.mxu0 0.0
        %1749 = vmatprep.subr.mxu0 0.0
        %1750 = vmatpush1.msra.mxu0 0.0
        %1751 = vmatprep.subr.mxu0 0.0
        %1752 = vmatpush1.msra.mxu0 0.0
        %1753 = vmatprep.subr.mxu0 0.0
        %1754 = vmatpush1.msra.mxu0 0.0
        %1755 = vmatprep.subr.mxu0 0.0
        %1756 = vmatpush1.msra.mxu0 0.0
        %1757 = vmatprep.subr.mxu0 0.0
        %1758 = vmatpush1.msra.mxu0 0.0
        %1759 = vmatprep.subr.mxu0 0.0
        %1760 = vmatpush1.msra.mxu0 0.0
        %1761 = vmatprep.subr.mxu0 0.0
        %1762 = vmatpush1.msra.mxu0 0.0
        %1763 = vmatprep.subr.mxu0 0.0
        %1764 = vmatpush1.msra.mxu0 0.0
        %1765 = vmatprep.subr.mxu0 0.0
        %1766 = vmatpush1.msra.mxu0 0.0
        %1767 = vmatprep.subr.mxu0 0.0
        %1768 = vmatpush1.msra.mxu0 0.0
        %1769 = vmatprep.subr.mxu0 0.0
        %1770 = vmatpush1.msra.mxu0 0.0
        %1771 = vmatprep.subr.mxu0 0.0
        %1772 = vmatpush1.msra.mxu0 0.0
        %1773 = vmatprep.subr.mxu0 0.0
        %1774 = vmatpush1.msra.mxu0 0.0
        %1775 = vmatprep.subr.mxu0 0.0
        %1776 = vmatpush1.msra.mxu0 0.0
        %1777 = vmatprep.subr.mxu0 0.0
        %1778 = vmatpush1.msra.mxu0 0.0
        %1779 = vmatprep.subr.mxu0 0.0
        %1780 = vmatpush1.msra.mxu0 0.0
        %1781 = vmatprep.subr.mxu0 0.0
        %1782 = vmatpush1.msra.mxu0 0.0
        %1783 = vmatprep.subr.mxu0 0.0
        %1784 = vmatpush1.msra.mxu0 0.0
        %1785 = vmatprep.subr.mxu0 0.0
        %1786 = vmatpush1.msra.mxu0 0.0
        %1787 = vmatprep.mubr.f32.mxu0 0.0
        %1788 = vmatmul.mubr.f32.gmra.mrb[0].mxu0 %v1718
        %v1789 = vpop.f32.mrb[0].mxu0
        %v1790 = vadd.f32 0.0, %v1789
        %v1791 = vpop.f32.mrb[0].mxu0
        %1792 = vmatprep.mubr.f32.mxu0 0.0
        %1793 = vmatmul.mubr.f32.gmra.mrb[0].mxu0 %v1721
        %v1794 = vpop.f32.mrb[0].mxu0
        %v1795 = vadd.f32 0.0, %v1794
        %v1796 = vpop.f32.mrb[0].mxu0
        %1797 = vdwg.mxu0
        %s1798 = scalar_lea.vmem [#allocation10], 112
        %v1799 = vld [vmem:[%s1798] sm:$0xff]
        %v1800 = vld [vmem:[%s1798 + $0x8] sm:$0xff]
        %1801 = vrot.lane.b32.xlu0 %v378, 72
        %v1802 = vpop.permute.xlu0 %1801
        %1803 = vrot.lane.b32.xlu0 %v379, 72
        %v1804 = vpop.permute.xlu0 %1803
        %1805 = vrot.lane.b32.xlu0 %v370, 8
        %v1806 = vpop.permute.xlu0 %1805
        %1807 = vrot.lane.b32.xlu0 %v374, 8
        %v1808 = vpop.permute.xlu0 %1807
        %v1809 = vsel %vm388, %v1802, 0
        %v1811 = vsel %vm388, %v1804, 0
        %v1813 = vsel %vm388, %v1806, 0
        %v1815 = vsel %vm388, %v1808, 0
        %1817 = vmatprep.subr.mxu0 0.0
        %1818 = vmatpush1.xpose.msra.mxu0 %v1813
        %1819 = vmatprep.subr.mxu0 0.0
        %1820 = vmatpush1.xpose.msra.mxu0 %v1815
        %1821 = vmatprep.subr.mxu0 0.0
        %1822 = vmatpush1.xpose.msra.mxu0 0.0
        %1823 = vmatprep.subr.mxu0 0.0
        %1824 = vmatpush1.xpose.msra.mxu0 0.0
        %1825 = vmatprep.subr.mxu0 0.0
        %1826 = vmatpush1.xpose.msra.mxu0 0.0
        %1827 = vmatprep.subr.mxu0 0.0
        %1828 = vmatpush1.xpose.msra.mxu0 0.0
        %1829 = vmatprep.subr.mxu0 0.0
        %1830 = vmatpush1.xpose.msra.mxu0 0.0
        %1831 = vmatprep.subr.mxu0 0.0
        %1832 = vmatpush1.xpose.msra.mxu0 0.0
        %1833 = vmatprep.subr.mxu0 0.0
        %1834 = vmatpush1.xpose.msra.mxu0 0.0
        %1835 = vmatprep.subr.mxu0 0.0
        %1836 = vmatpush1.xpose.msra.mxu0 0.0
        %1837 = vmatprep.subr.mxu0 0.0
        %1838 = vmatpush1.xpose.msra.mxu0 0.0
        %1839 = vmatprep.subr.mxu0 0.0
        %1840 = vmatpush1.xpose.msra.mxu0 0.0
        %1841 = vmatprep.subr.mxu0 0.0
        %1842 = vmatpush1.xpose.msra.mxu0 0.0
        %1843 = vmatprep.subr.mxu0 0.0
        %1844 = vmatpush1.xpose.msra.mxu0 0.0
        %1845 = vmatprep.subr.mxu0 0.0
        %1846 = vmatpush1.xpose.msra.mxu0 0.0
        %1847 = vmatprep.subr.mxu0 0.0
        %1848 = vmatpush1.xpose.msra.mxu0 0.0
        %1849 = vmatprep.subr.mxu0 0.0
        %1850 = vmatpush1.xpose.msra.mxu0 0.0
        %1851 = vmatprep.subr.mxu0 0.0
        %1852 = vmatpush1.xpose.msra.mxu0 0.0
        %1853 = vmatprep.subr.mxu0 0.0
        %1854 = vmatpush1.xpose.msra.mxu0 0.0
        %1855 = vmatprep.subr.mxu0 0.0
        %1856 = vmatpush1.xpose.msra.mxu0 0.0
        %1857 = vmatprep.subr.mxu0 0.0
        %1858 = vmatpush1.xpose.msra.mxu0 0.0
        %1859 = vmatprep.subr.mxu0 0.0
        %1860 = vmatpush1.xpose.msra.mxu0 0.0
        %1861 = vmatprep.subr.mxu0 0.0
        %1862 = vmatpush1.xpose.msra.mxu0 0.0
        %1863 = vmatprep.subr.mxu0 0.0
        %1864 = vmatpush1.xpose.msra.mxu0 0.0
        %1865 = vmatprep.subr.mxu0 0.0
        %1866 = vmatpush1.xpose.msra.mxu0 0.0
        %1867 = vmatprep.subr.mxu0 0.0
        %1868 = vmatpush1.xpose.msra.mxu0 0.0
        %1869 = vmatprep.subr.mxu0 0.0
        %1870 = vmatpush1.xpose.msra.mxu0 0.0
        %1871 = vmatprep.subr.mxu0 0.0
        %1872 = vmatpush1.xpose.msra.mxu0 0.0
        %1873 = vmatprep.subr.mxu0 0.0
        %1874 = vmatpush1.xpose.msra.mxu0 0.0
        %1875 = vmatprep.subr.mxu0 0.0
        %1876 = vmatpush1.xpose.msra.mxu0 0.0
        %1877 = vmatprep.subr.mxu0 0.0
        %1878 = vmatpush1.xpose.msra.mxu0 0.0
        %1879 = vmatprep.subr.mxu0 0.0
        %1880 = vmatpush1.xpose.msra.mxu0 0.0
        %1881 = vmatprep.mubr.f32.mxu0 0.0
        %1882 = vmatmul.mubr.f32.gmra.mrb[0].mxu0 %v1809
        %v1883 = vpop.f32.mrb[0].mxu0
        %v1884 = vadd.f32 %v1799, %v1883
        %v1885 = vpop.f32.mrb[0].mxu0
        %1886 = vmatprep.mubr.f32.mxu0 0.0
        %1887 = vmatmul.mubr.f32.gmra.mrb[0].mxu0 %v1811
        %v1888 = vpop.f32.mrb[0].mxu0
        %v1889 = vadd.f32 %v1800, %v1888
        %v1890 = vpop.f32.mrb[0].mxu0
        %1891 = vdwg.mxu0
        %v1892 = vsel %vm474, %v1884, -inf
        %1893 = vmax.xlane.f32.xlu0 %v1892
        %v1894 = vpop.xlane.xlu0 %1893
        %v1895 = vsel %vm474, %v1889, -inf
        %1896 = vmax.xlane.f32.xlu0 %v1895
        %v1897 = vpop.xlane.xlu0 %1896
        %v1898 = vsub.f32 %v1884, %v1894
        %v1899 = vsub.f32 %v1889, %v1897
        %v1900 = vmul.f32 %v1898, 1.442695
        %v1901 = vpow.pop %v1900
        %v1902 = vmul.f32 %v1899, 1.442695
        %v1903 = vpow.pop %v1902
        %v1904 = vsel %vm474, %v1901, 0.0
        %1905 = vadd.xlane.f32.xlu0 %v1904
        %v1906 = vpop.xlane.xlu0 %1905
        %v1907 = vsel %vm474, %v1903, 0.0
        %1908 = vadd.xlane.f32.xlu0 %v1907
        %v1909 = vpop.xlane.xlu0 %1908
        %v1910 = vrcp.pop %v1906
        %v1911 = vrcp.pop %v1909
        %v1912 = vmul.f32 %v1901, %v1910
        %v1913 = vmul.f32 %v1903, %v1911
        %1914 = vrot.lane.b32.xlu0 %v372, 72
        %v1915 = vpop.permute.xlu0 %1914
        %1916 = vrot.lane.b32.xlu0 %v376, 72
        %v1917 = vpop.permute.xlu0 %1916
        %v1921 = vsel %vm474, %v1912, 0
        %v1924 = vsel %vm474, %v1913, 0
        %1926 = vmatprep.subr.mxu0 0.0
        %1927 = vmatpush1.msra.mxu0 %v1915
        %1928 = vmatprep.subr.mxu0 0.0
        %1929 = vmatpush1.msra.mxu0 %v1917
        %1930 = vmatprep.subr.mxu0 0.0
        %1931 = vmatpush1.msra.mxu0 0.0
        %1932 = vmatprep.subr.mxu0 0.0
        %1933 = vmatpush1.msra.mxu0 0.0
        %1934 = vmatprep.subr.mxu0 0.0
        %1935 = vmatpush1.msra.mxu0 0.0
        %1936 = vmatprep.subr.mxu0 0.0
        %1937 = vmatpush1.msra.mxu0 0.0
        %1938 = vmatprep.subr.mxu0 0.0
        %1939 = vmatpush1.msra.mxu0 0.0
        %1940 = vmatprep.subr.mxu0 0.0
        %1941 = vmatpush1.msra.mxu0 0.0
        %1942 = vmatprep.subr.mxu0 0.0
        %1943 = vmatpush1.msra.mxu0 0.0
        %1944 = vmatprep.subr.mxu0 0.0
        %1945 = vmatpush1.msra.mxu0 0.0
        %1946 = vmatprep.subr.mxu0 0.0
        %1947 = vmatpush1.msra.mxu0 0.0
        %1948 = vmatprep.subr.mxu0 0.0
        %1949 = vmatpush1.msra.mxu0 0.0
        %1950 = vmatprep.subr.mxu0 0.0
        %1951 = vmatpush1.msra.mxu0 0.0
        %1952 = vmatprep.subr.mxu0 0.0
        %1953 = vmatpush1.msra.mxu0 0.0
        %1954 = vmatprep.subr.mxu0 0.0
        %1955 = vmatpush1.msra.mxu0 0.0
        %1956 = vmatprep.subr.mxu0 0.0
        %1957 = vmatpush1.msra.mxu0 0.0
        %1958 = vmatprep.subr.mxu0 0.0
        %1959 = vmatpush1.msra.mxu0 0.0
        %1960 = vmatprep.subr.mxu0 0.0
        %1961 = vmatpush1.msra.mxu0 0.0
        %1962 = vmatprep.subr.mxu0 0.0
        %1963 = vmatpush1.msra.mxu0 0.0
        %1964 = vmatprep.subr.mxu0 0.0
        %1965 = vmatpush1.msra.mxu0 0.0
        %1966 = vmatprep.subr.mxu0 0.0
        %1967 = vmatpush1.msra.mxu0 0.0
        %1968 = vmatprep.subr.mxu0 0.0
        %1969 = vmatpush1.msra.mxu0 0.0
        %1970 = vmatprep.subr.mxu0 0.0
        %1971 = vmatpush1.msra.mxu0 0.0
        %1972 = vmatprep.subr.mxu0 0.0
        %1973 = vmatpush1.msra.mxu0 0.0
        %1974 = vmatprep.subr.mxu0 0.0
        %1975 = vmatpush1.msra.mxu0 0.0
        %1976 = vmatprep.subr.mxu0 0.0
        %1977 = vmatpush1.msra.mxu0 0.0
        %1978 = vmatprep.subr.mxu0 0.0
        %1979 = vmatpush1.msra.mxu0 0.0
        %1980 = vmatprep.subr.mxu0 0.0
        %1981 = vmatpush1.msra.mxu0 0.0
        %1982 = vmatprep.subr.mxu0 0.0
        %1983 = vmatpush1.msra.mxu0 0.0
        %1984 = vmatprep.subr.mxu0 0.0
        %1985 = vmatpush1.msra.mxu0 0.0
        %1986 = vmatprep.subr.mxu0 0.0
        %1987 = vmatpush1.msra.mxu0 0.0
        %1988 = vmatprep.subr.mxu0 0.0
        %1989 = vmatpush1.msra.mxu0 0.0
        %1990 = vmatprep.mubr.f32.mxu0 0.0
        %1991 = vmatmul.mubr.f32.gmra.mrb[0].mxu0 %v1921
        %v1992 = vpop.f32.mrb[0].mxu0
        %v1993 = vadd.f32 0.0, %v1992
        %v1994 = vpop.f32.mrb[0].mxu0
        %1995 = vmatprep.mubr.f32.mxu0 0.0
        %1996 = vmatmul.mubr.f32.gmra.mrb[0].mxu0 %v1924
        %v1997 = vpop.f32.mrb[0].mxu0
        %v1998 = vadd.f32 0.0, %v1997
        %v1999 = vpop.f32.mrb[0].mxu0
        %2000 = vdwg.mxu0
        %2003 = vrot.lane.b32.xlu0 %v775, 8
        %v2004 = vpop.permute.xlu0 %2003
        %2005 = vrot.lane.b32.xlu0 %v780, 8
        %v2006 = vpop.permute.xlu0 %2005
        %2011 = vrot.lane.b32.xlu0 %v978, 16
        %v2012 = vpop.permute.xlu0 %2011
        %2013 = vrot.lane.b32.xlu0 %v983, 16
        %v2014 = vpop.permute.xlu0 %2013
        %2019 = vrot.lane.b32.xlu0 %v1181, 24
        %v2020 = vpop.permute.xlu0 %2019
        %2021 = vrot.lane.b32.xlu0 %v1186, 24
        %v2022 = vpop.permute.xlu0 %2021
        %2027 = vrot.lane.b32.xlu0 %v1384, 32
        %v2028 = vpop.permute.xlu0 %2027
        %2029 = vrot.lane.b32.xlu0 %v1389, 32
        %v2030 = vpop.permute.xlu0 %2029
        %2035 = vrot.lane.b32.xlu0 %v1587, 40
        %v2036 = vpop.permute.xlu0 %2035
        %2037 = vrot.lane.b32.xlu0 %v1592, 40
        %v2038 = vpop.permute.xlu0 %2037
        %2043 = vrot.lane.b32.xlu0 %v1790, 48
        %v2044 = vpop.permute.xlu0 %2043
        %2045 = vrot.lane.b32.xlu0 %v1795, 48
        %v2046 = vpop.permute.xlu0 %2045
        %2051 = vrot.lane.b32.xlu0 %v1993, 56
        %v2052 = vpop.permute.xlu0 %2051
        %2053 = vrot.lane.b32.xlu0 %v1998, 56
        %v2054 = vpop.permute.xlu0 %2053
        %v2057 = vsel %vm388, %v570, %v2004
        %v2058 = vsel %vm388, %v575, %v2006
        %v2059 = vsel %vm474, %v2057, %v2012
        %v2060 = vsel %vm474, %v2058, %v2014
        %vm2061 = vcmask 195584
        %v2062 = vsel %vm2061, %v2059, %v2020
        %v2063 = vsel %vm2061, %v2060, %v2022
        %v2064 = vsel %vm331, %v2062, %v2028
        %v2065 = vsel %vm331, %v2063, %v2030
        %vm2066 = vcmask 326656
        %v2067 = vsel %vm2066, %v2064, %v2036
        %v2068 = vsel %vm2066, %v2065, %v2038
        %vm2069 = vcmask 392192
        %v2070 = vsel %vm2069, %v2067, %v2044
        %v2071 = vsel %vm2069, %v2068, %v2046
        %vm2072 = vcmask 457728
        %v2073 = vsel %vm2072, %v2070, %v2052
        %v2074 = vsel %vm2072, %v2071, %v2054
        %v2075 = vpack.c.bf16 %v2074, %v2073
        %v2076 = vld [vmem:[#allocation7] sm:$0xf]
        %v2077 = vld [vmem:[#allocation7 + $0x4] sm:$0xf]
        %v2078 = vld [vmem:[#allocation7 + $0x8] sm:$0xf]
        %v2079 = vld [vmem:[#allocation7 + $0xc] sm:$0xf]
        %v2080 = vld [vmem:[#allocation7 + $0x10] sm:$0xf]
        %v2081 = vld [vmem:[#allocation7 + $0x14] sm:$0xf]
        %v2082 = vld [vmem:[#allocation7 + $0x18] sm:$0xf]
        %v2083 = vld [vmem:[#allocation7 + $0x1c] sm:$0xf]
        %v2084 = vld [vmem:[#allocation8] sm:$0x1]
        %v2086 = vlaneseq
        %v2087 = vshrl.u32 %v2086, 7
        %v2088 = vsub.s32 0, %v2087
        %v2089 = vrot.slane %v2084, %v2088
        %v2099 = vunpack.c.l.b16 %v2076
        %v2100 = vunpack.c.l.b16 %v2077
        %v2101 = vunpack.c.l.b16 %v2078
        %v2102 = vunpack.c.l.b16 %v2079
        %v2103 = vunpack.c.l.b16 %v2080
        %v2104 = vunpack.c.l.b16 %v2081
        %v2105 = vunpack.c.l.b16 %v2082
        %v2106 = vunpack.c.l.b16 %v2083
        %v2107 = vpack.c.b16 %v2100, %v2099
        %v2108 = vpack.c.b16 %v2102, %v2101
        %v2109 = vpack.c.b16 %v2104, %v2103
        %v2110 = vpack.c.b16 %v2106, %v2105
        %vm2115 = vcmask 523264
        %v2117 = vsel %vm2115, %v2075, 0
        %2119 = vmatprep.subr.bf16.mxu0 0
        %2120 = vmatpush1.bf16.msra.mxu0 %v2107
        %2121 = vmatprep.subr.bf16.mxu0 0
        %2122 = vmatpush1.bf16.msra.mxu0 %v2108
        %2123 = vmatprep.subr.bf16.mxu0 0
        %2124 = vmatpush1.bf16.msra.mxu0 %v2109
        %2125 = vmatprep.subr.bf16.mxu0 0
        %2126 = vmatpush1.bf16.msra.mxu0 %v2110
        %2127 = vmatprep.subr.bf16.mxu0 0
        %2128 = vmatpush1.bf16.msra.mxu0 0
        %2129 = vmatprep.subr.bf16.mxu0 0
        %2130 = vmatpush1.bf16.msra.mxu0 0
        %2131 = vmatprep.subr.bf16.mxu0 0
        %2132 = vmatpush1.bf16.msra.mxu0 0
        %2133 = vmatprep.subr.bf16.mxu0 0
        %2134 = vmatpush1.bf16.msra.mxu0 0
        %2135 = vmatprep.subr.bf16.mxu0 0
        %2136 = vmatpush1.bf16.msra.mxu0 0
        %2137 = vmatprep.subr.bf16.mxu0 0
        %2138 = vmatpush1.bf16.msra.mxu0 0
        %2139 = vmatprep.subr.bf16.mxu0 0
        %2140 = vmatpush1.bf16.msra.mxu0 0
        %2141 = vmatprep.subr.bf16.mxu0 0
        %2142 = vmatpush1.bf16.msra.mxu0 0
        %2143 = vmatprep.subr.bf16.mxu0 0
        %2144 = vmatpush1.bf16.msra.mxu0 0
        %2145 = vmatprep.subr.bf16.mxu0 0
        %2146 = vmatpush1.bf16.msra.mxu0 0
        %2147 = vmatprep.subr.bf16.mxu0 0
        %2148 = vmatpush1.bf16.msra.mxu0 0
        %2149 = vmatprep.subr.bf16.mxu0 0
        %2150 = vmatpush1.bf16.msra.mxu0 0
        %2151 = vmatprep.mubr.bf16.mxu0 0
        %2152 = vmatmul.mubr.bf16.gmra.mrb[0].mxu0 %v2117
        %v2153 = vpop.f32.mrb[0].mxu0
        %v2154 = vadd.f32 %v2089, %v2153
        %v2155 = vpop.f32.mrb[0].mxu0
        %v2156 = vpop.f32.mrb[0].mxu0
        %v2157 = vadd.f32 %v2089, %v2156
        %v2158 = vpop.f32.mrb[0].mxu0
        %2159 = vdwg.mxu0
        %2160 = vst.msk [vmem:[%s298] sm:$0xff] %vm331, %v2154
        %2161 = vst.msk [vmem:[%s298 + $0x8] sm:$0xff] %vm331, %v2157
        %s2162 = sand.u32 %s142, 1
        %s2163 = scalar_lea.sflag [#allocation4], %s2162
        %s2164 = sand.u32 %s142, 1
        %s2165 = smul.addr %s2164, 16
        %s2166 = scalar_lea.vmem [#allocation11], %s2165
        // Predicated region
        $region61: #{temporal_attention.1} parent=39 // pred_check
          %p2167 = pneg %p152
        $region62: #{temporal_attention.1} parent=39 // pred_check_branch
          %2169 = sbr.rel (%p2167) target = $region64
        $region63: #{temporal_attention.1} parent=39 // pred_region
          %s2171 = ssub.s32 256, 256
          %2172 = vsyncadd %s2163, %s2171
          %s2173 = smul.addr %s24, 2
          %s2174 = smul.addr %s2173, 128
          %s2175 = scalar_lea.hbm %s5, %s2174
          %s2176 = sshll.u32 %s2166, 4
          %s2177 = int_to_ptr.vmem [resolvable:$true] %s2176
          %2182 = dma.vmem_to_hbm [thread:$0]  %s2177, 256, %s2175, %s2163, 128, 128, 8
        $region64: #{temporal_attention.1} parent=39 // pred_fallthru
          _
      $region40: #{temporal_attention.1} parent=5 // pred_fallthru
        _
      %p2183 = scmp.le.s32.totalorder 2, %s19
      // Predicated region
      $region65: #{temporal_attention.1} parent=5 // pred_check
        %p2184 = pneg %p2183
      $region66: #{temporal_attention.1} parent=5 // pred_check_branch
        %2186 = sbr.rel (%p2184) target = $region68
      $region67: #{temporal_attention.1} parent=5 // pred_region
        %s2187 = ssub.s32 %s19, 2
        // Predicated region
        $region69: #{temporal_attention.1} parent=67 // pred_check
          %p2188 = pneg %p158
        $region70: #{temporal_attention.1} parent=67 // pred_check_branch
          %2190 = sbr.rel (%p2188) target = $region72
        $region71: #{temporal_attention.1} parent=67 // pred_region
          %s2191 = sand.u32 %s143, 1
          %s2192 = scalar_lea.sflag [#allocation4], %s2191
          %s2193 = sand.u32 %s143, 1
          %s2194 = smul.addr %s2193, 16
          %s2195 = scalar_lea.vmem [#allocation11], %s2194
          %2196 = dma.done %s2192, 256
        $region72: #{temporal_attention.1} parent=67 // pred_fallthru
          _
      $region68: #{temporal_attention.1} parent=5 // pred_fallthru
        _
    $region6: #{temporal_attention.1} parent=1 // loop_footer
      %s23 = sadd.s32 1, %s19
    $region7: #{temporal_attention.1} parent=1 // loop_footer_branch
      %18 = sbr.rel target = $region3
    $region8: #{temporal_attention.1} parent=1 // loop_exit
      _
    %2197 = vsyncpa [#allocation3], 1
    %s2198 = scalar_lea.sflag [#allocation3], 1
    %2199 = vsyncpa %s2198, 1
    %2200 = vsyncpa [#allocation6], 1
    %2201 = vsyncpa [#allocation9], 1
    %2202 = vsyncpa [#allocation4], 1
    %s2203 = scalar_lea.sflag [#allocation4], 1
    %2204 = vsyncpa %s2203, 1

</llo_original>
